<compile_context>
chip_gen: v7x
topology: tpu7x:2x2x1
jax: 0.10.0
libtpu: 0.0.40
codegen_flags: <defaults>
</compile_context>

<pallas_src>
import functools

import jax
import jax.numpy as jnp
from jax import lax
from jax.experimental import pallas as pl
from jax.experimental.pallas import tpu as pltpu


# ----------------------------------------------------------------------------
# Fused kernel:  y = x @ Wt ;  per-chunk LayerNorm(y) with chunk size c_out
# ----------------------------------------------------------------------------
def _expand_ln_kernel(x_ref, wt_ref, p_ref, g_ref, b_ref, o_ref, *, eps):
    # x_ref: (TM, C) [bf16/f32], wt_ref: (C, C2) [bf16/f32]
    # p_ref: (C2, C2) f32 block-diagonal matrix with 1/c_out in each
    #        (c_out x c_out) diagonal block -> segmented mean broadcast.
    # g_ref/b_ref: (1, C2) f32 (LayerNorm gamma/beta tiled over the p1*p2 chunks)
    y = jnp.dot(x_ref[...], wt_ref[...], preferred_element_type=jnp.float32)
    mean = jnp.dot(y, p_ref[...], preferred_element_type=jnp.float32)
    d = y - mean
    var = jnp.dot(d * d, p_ref[...], preferred_element_type=jnp.float32)
    o_ref[...] = (d * lax.rsqrt(var + eps) * g_ref[...] + b_ref[...]).astype(o_ref.dtype)


def _pick_row_tile(m):
    for t in (512, 256, 128):
        if m >= t:
            return t
    return max(8, ((m + 7) // 8) * 8)  # tiny M: single (8-aligned) tile


def patch_expand2d(x_nchw, w, gamma, beta, *, dim_scale=2, eps=1e-5,
                   use_bf16=True, row_tile=None):
    """PatchExpand2D forward.  x: (B, dim, H, W) f32; w: (dim_scale*dim, dim)
    (torch nn.Linear weight, no bias); gamma/beta: (dim // dim_scale,)."""
    B, C, H, W = x_nchw.shape
    C2 = dim_scale * C
    c_out = C // dim_scale
    M = B * H * W

    # tokens, channels-last
    xf = jnp.transpose(x_nchw, (0, 2, 3, 1)).reshape(M, C)
    wt = jnp.transpose(w)  # (C, C2)

    mm_dtype = jnp.bfloat16 if use_bf16 else jnp.float32
    xf = xf.astype(mm_dtype)
    wt = wt.astype(mm_dtype)

    # block-diagonal broadcast matrix for the grouped LayerNorm statistics
    k_idx = jnp.arange(C2) // c_out
    pmat = (k_idx[:, None] == k_idx[None, :]).astype(jnp.float32) / float(c_out)

    # LayerNorm(c_out) applies the same gamma/beta to every (p1,p2) chunk
    g_t = jnp.tile(gamma.astype(jnp.float32), dim_scale * dim_scale).reshape(1, C2)
    b_t = jnp.tile(beta.astype(jnp.float32), dim_scale * dim_scale).reshape(1, C2)

    # pad M up to a multiple of the row tile (never one giant block)
    TM = row_tile or _pick_row_tile(M)
    Mp = ((M + TM - 1) // TM) * TM
    if Mp != M:
        xf = jnp.pad(xf, ((0, Mp - M), (0, 0)))

    out = pl.pallas_call(
        functools.partial(_expand_ln_kernel, eps=eps),
        grid=(Mp // TM,),
        in_specs=[
            pl.BlockSpec((TM, C), lambda i: (i, 0)),
            pl.BlockSpec((C, C2), lambda i: (0, 0)),
            pl.BlockSpec((C2, C2), lambda i: (0, 0)),
            pl.BlockSpec((1, C2), lambda i: (0, 0)),
            pl.BlockSpec((1, C2), lambda i: (0, 0)),
        ],
        out_specs=pl.BlockSpec((TM, C2), lambda i: (i, 0)),
        out_shape=jax.ShapeDtypeStruct((Mp, C2), jnp.float32),
        compiler_params=pltpu.CompilerParams(
            dimension_semantics=("parallel",)),
    )(xf, wt, pmat, g_t, b_t)

    # host-side layout plumbing: 'b h w (p1 p2 c) -> b (h p1) (w p2) c', then NCHW
    y = out[:M].reshape(B, H, W, dim_scale, dim_scale, c_out)
    y = jnp.transpose(y, (0, 1, 3, 2, 4, 5)).reshape(
        B, H * dim_scale, W * dim_scale, c_out)
    return jnp.transpose(y, (0, 3, 1, 2))


# ----------------------------------------------------------------------------
# Pure-JAX reference (same bf16 matmul inputs, f32 accumulation) for checking
# ----------------------------------------------------------------------------
def patch_expand2d_ref(x_nchw, w, gamma, beta, *, dim_scale=2, eps=1e-5,
                       use_bf16=True):
    B, C, H, W = x_nchw.shape
    c_out = C // dim_scale
    mm_dtype = jnp.bfloat16 if use_bf16 else jnp.float32
    xh = jnp.transpose(x_nchw, (0, 2, 3, 1)).astype(mm_dtype)
    wt = jnp.transpose(w).astype(mm_dtype)
    y = jnp.dot(xh, wt, preferred_element_type=jnp.float32)        # (B,H,W,2C)
    y = y.reshape(B, H, W, dim_scale, dim_scale, c_out)
    mu = jnp.mean(y, axis=-1, keepdims=True)
    var = jnp.mean((y - mu) ** 2, axis=-1, keepdims=True)
    y = (y - mu) * lax.rsqrt(var + eps) * gamma + beta
    y = jnp.transpose(y, (0, 1, 3, 2, 4, 5)).reshape(
        B, H * dim_scale, W * dim_scale, c_out)
    return jnp.transpose(y, (0, 3, 1, 2))


if __name__ == "__main__":
    key = jax.random.PRNGKey(0)
    kx, kw, kg, kb = jax.random.split(key, 4)

    B, dim, H, W = 2, 64, 16, 16
    dim_scale = 2

    x = jax.random.normal(kx, (B, dim, H, W), jnp.float32)
    w = 0.1 * jax.random.normal(kw, (dim_scale * dim, dim), jnp.float32)
    gamma = 1.0 + 0.05 * jax.random.normal(kg, (dim // dim_scale,), jnp.float32)
    beta = 0.05 * jax.random.normal(kb, (dim // dim_scale,), jnp.float32)

    fwd = jax.jit(functools.partial(patch_expand2d, dim_scale=dim_scale))
    out = fwd(x, w, gamma, beta)
    jax.block_until_ready(out)

    assert out.shape == (B, dim // dim_scale, H * dim_scale, W * dim_scale)
    assert out.dtype == jnp.float32

    ref = patch_expand2d_ref(x, w, gamma, beta, dim_scale=dim_scale)
    err = float(jnp.max(jnp.abs(out - ref)))
    assert err < 1e-2, f"max abs error {err}"

    print("KERNEL_OK")
</pallas_src>

<mosaic_0001>
module attributes {stable_mosaic.version = 11 : i64} {
  func.func @_expand_ln_kernel(%arg0: i32, %arg1: memref<512x64xbf16, #tpu.memory_space<vmem>>, %arg2: memref<64x128xbf16, #tpu.memory_space<vmem>>, %arg3: memref<128x128xf32, #tpu.memory_space<vmem>>, %arg4: memref<1x128xf32, #tpu.memory_space<vmem>>, %arg5: memref<1x128xf32, #tpu.memory_space<vmem>>, %arg6: memref<512x128xf32, #tpu.memory_space<vmem>>) attributes {dimension_semantics = [#tpu.dimension_semantics<parallel>], iteration_bounds = array<i64: 1>, scalar_prefetch = 0 : i64, scratch_operands = 0 : i64, tpu.core_type = #tpu.core_type<tc>, window_params = [{transform_indices = @transform_0, window_bounds = array<i64: 512, 64>}, {pipeline_mode = #tpu.pipeline_mode<synchronous>, transform_indices = @transform_1, window_bounds = array<i64: 64, 128>}, {pipeline_mode = #tpu.pipeline_mode<synchronous>, transform_indices = @transform_2, window_bounds = array<i64: 128, 128>}, {pipeline_mode = #tpu.pipeline_mode<synchronous>, transform_indices = @transform_3, window_bounds = array<i64: 1, 128>}, {pipeline_mode = #tpu.pipeline_mode<synchronous>, transform_indices = @transform_4, window_bounds = array<i64: 1, 128>}, {transform_indices = @transform_5, window_bounds = array<i64: 512, 128>}]} {
    %c0 = arith.constant 0 : index
    %c0_0 = arith.constant 0 : index
    %0 = vector.load %arg1[%c0, %c0_0] : memref<512x64xbf16, #tpu.memory_space<vmem>>, vector<512x64xbf16>
    %c0_1 = arith.constant 0 : index
    %c0_2 = arith.constant 0 : index
    %1 = vector.load %arg2[%c0_1, %c0_2] : memref<64x128xbf16, #tpu.memory_space<vmem>>, vector<64x128xbf16>
    %cst = arith.constant dense<0.000000e+00> : vector<512x128xf32>
    %2 = tpu.matmul %0, %1, %cst {dimension_numbers = #tpu.dot_dimension_numbers<[1], [0], [0], [1], [0, 0, 1, 1], [], []>} : vector<512x64xbf16>, vector<64x128xbf16>, vector<512x128xf32> -> vector<512x128xf32>
    %c0_3 = arith.constant 0 : index
    %c0_4 = arith.constant 0 : index
    %3 = vector.load %arg3[%c0_3, %c0_4] : memref<128x128xf32, #tpu.memory_space<vmem>>, vector<128x128xf32>
    %cst_5 = arith.constant dense<0.000000e+00> : vector<512x128xf32>
    %4 = tpu.matmul %2, %3, %cst_5 {dimension_numbers = #tpu.dot_dimension_numbers<[1], [0], [0], [1], [0, 0, 1, 1], [], []>} : vector<512x128xf32>, vector<128x128xf32>, vector<512x128xf32> -> vector<512x128xf32>
    %5 = arith.subf %2, %4 : vector<512x128xf32>
    %6 = arith.mulf %5, %5 : vector<512x128xf32>
    %c0_6 = arith.constant 0 : index
    %c0_7 = arith.constant 0 : index
    %7 = vector.load %arg3[%c0_6, %c0_7] : memref<128x128xf32, #tpu.memory_space<vmem>>, vector<128x128xf32>
    %cst_8 = arith.constant dense<0.000000e+00> : vector<512x128xf32>
    %8 = tpu.matmul %6, %7, %cst_8 {dimension_numbers = #tpu.dot_dimension_numbers<[1], [0], [0], [1], [0, 0, 1, 1], [], []>} : vector<512x128xf32>, vector<128x128xf32>, vector<512x128xf32> -> vector<512x128xf32>
    %cst_9 = arith.constant 9.99999974E-6 : f32
    %9 = vector.broadcast %cst_9 : f32 to vector<512x128xf32>
    %10 = arith.addf %8, %9 : vector<512x128xf32>
    %11 = math.rsqrt %10 : vector<512x128xf32>
    %12 = arith.mulf %5, %11 : vector<512x128xf32>
    %c0_10 = arith.constant 0 : index
    %c0_11 = arith.constant 0 : index
    %13 = vector.load %arg4[%c0_10, %c0_11] : memref<1x128xf32, #tpu.memory_space<vmem>>, vector<1x128xf32>
    %14 = vector.broadcast %13 : vector<1x128xf32> to vector<512x128xf32>
    %15 = arith.mulf %12, %14 : vector<512x128xf32>
    %c0_12 = arith.constant 0 : index
    %c0_13 = arith.constant 0 : index
    %16 = vector.load %arg5[%c0_12, %c0_13] : memref<1x128xf32, #tpu.memory_space<vmem>>, vector<1x128xf32>
    %17 = vector.broadcast %16 : vector<1x128xf32> to vector<512x128xf32>
    %18 = arith.addf %15, %17 : vector<512x128xf32>
    %c0_14 = arith.constant 0 : index
    %c0_15 = arith.constant 0 : index
    %19 = vector.load %arg6[%c0_14, %c0_15] : memref<512x128xf32, #tpu.memory_space<vmem>>, vector<512x128xf32>
    tpu.vector_store %arg6[%c0_14, %c0_15], %18 {strides = array<i32>} : memref<512x128xf32, #tpu.memory_space<vmem>>, vector<512x128xf32>,
    return
  }
  func.func @transform_0(%arg0: i32) -> (i32, i32) {
    %c0_i32 = arith.constant 0 : i32
    %c0_i32_0 = arith.constant 0 : i32
    return %arg0, %c0_i32 : i32, i32
  }
  func.func @transform_1(%arg0: i32) -> (i32, i32) {
    %c0_i32 = arith.constant 0 : i32
    %c0_i32_0 = arith.constant 0 : i32
    %c0_i32_1 = arith.constant 0 : i32
    return %c0_i32, %c0_i32_0 : i32, i32
  }
  func.func @transform_2(%arg0: i32) -> (i32, i32) {
    %c0_i32 = arith.constant 0 : i32
    %c0_i32_0 = arith.constant 0 : i32
    %c0_i32_1 = arith.constant 0 : i32
    return %c0_i32, %c0_i32_0 : i32, i32
  }
  func.func @transform_3(%arg0: i32) -> (i32, i32) {
    %c0_i32 = arith.constant 0 : i32
    %c0_i32_0 = arith.constant 0 : i32
    %c0_i32_1 = arith.constant 0 : i32
    return %c0_i32, %c0_i32_0 : i32, i32
  }
  func.func @transform_4(%arg0: i32) -> (i32, i32) {
    %c0_i32 = arith.constant 0 : i32
    %c0_i32_0 = arith.constant 0 : i32
    %c0_i32_1 = arith.constant 0 : i32
    return %c0_i32, %c0_i32_0 : i32, i32
  }
  func.func @transform_5(%arg0: i32) -> (i32, i32) {
    %c0_i32 = arith.constant 0 : i32
    %c0_i32_0 = arith.constant 0 : i32
    return %arg0, %c0_i32 : i32, i32
  }
}

</mosaic_0001>

<llo_original>
// kernel: tile.14
$region0: #{tile.14}
  %s0 = inlined_call_operand.vmem [shape: f32[4,32], index: 0, kind: input, shape index: {}]
  %s1 = inlined_call_operand.vmem [shape: f32[1,128], index: 1, kind: output, shape index: {}]
  $region1: #{tile.14} parent=0
    #allocation0 [shape = 'u8[4096]{0}', space=vmem, size = 0x1000, scoped, tag = 'scoped mem for output reshape']
    #allocation1 [shape = 'u8[4096]{0}', space=vmem, size = 0x1000, scoped, tag = 'scoped mem for input reshape']
    %s3 = sshllo.u32 0, 4
    %v4 = vld [vmem:[%s0] sm:%s3]
    %5 = vst [vmem:[#allocation1] sm:%s3] %v4
    %v6 = vld [vmem:[#allocation1] sm:$0x1]
    %vm7 = vcmask 261120
    %8 = vst.msk [vmem:[#allocation0] sm:$0x1] %vm7, %v6
    %s9 = scalar_lea.vmem [#allocation1], 3
    %v10 = vld [vmem:[%s9] sm:$0x1]
    %11 = vrot.lane.b32.xlu0 %v10, 96
    %v12 = vpop.permute.xlu0 %11
    %vm13 = vcmask 1048320
    %14 = vst.msk [vmem:[#allocation0] sm:$0x1] %vm13, %v12
    %s15 = scalar_lea.vmem [#allocation1], 2
    %v16 = vld [vmem:[%s15] sm:$0x1]
    %17 = vrot.lane.b32.xlu0 %v16, 64
    %v18 = vpop.permute.xlu0 %17
    %vm19 = vcmask 785920
    %20 = vst.msk [vmem:[#allocation0] sm:$0x1] %vm19, %v18
    %s21 = scalar_lea.vmem [#allocation1], 1
    %v22 = vld [vmem:[%s21] sm:$0x1]
    %23 = vrot.lane.b32.xlu0 %v22, 32
    %v24 = vpop.permute.xlu0 %23
    %vm25 = vcmask 523520
    %26 = vst.msk [vmem:[#allocation0] sm:$0x1] %vm25, %v24
    %s28 = sshllo.u32 0, 1
    %v30 = vld [vmem:[#allocation0] sm:%s28]
    %s31 = sshllo.u32 0, 1
    %32 = vst [vmem:[%s1] sm:%s31] %v30

// kernel: tile.13
$region0: #{tile.13}
  #allocation0 [shape = 's32[1]{0}', space=sflag, size = 0x4, scoped, tag = 'scoped memory for tile.13']
  %s0 = inlined_call_operand.vmem [shape: f32[32], index: 0, kind: input, shape index: {}]
  %s1 = inlined_call_operand.vmem [shape: f32[4,32], index: 1, kind: output, shape index: {}]
  // Predicated region
  $region2: #{tile.13} parent=0 // pred_check
    _
  $region3: #{tile.13} parent=0 // pred_check_branch
    %3 = sbr.rel (0) target = $region5
  $region4: #{tile.13} parent=0 // pred_region
    _
  $region5: #{tile.13} parent=0 // pred_fallthru
    _
  %v4 = vld [vmem:[%s0] ss:$0 sm:$0xff]
  %5 = vst [vmem:[%s1] sm:$0xf] %v4

// kernel: patch_expand2d.1
$region0: #{patch_expand2d.1}
  #allocation0 [shape = 'u32[]', space=smem, size = 0x4, offset = 0x4, fixed_abs, tag = 'smem constant byte address 0x4 - core index']
  #allocation1 [shape = 'u32[144,128]{1,0:T(1,128)}', space=vmem, size = 0x12000, scoped, tag = 'internal scratch']
  %s0 = inlined_call_operand.vmem [shape: bf16[512,64], index: 0, kind: input, shape index: {}]
  %s1 = inlined_call_operand.vmem [shape: bf16[64,128], index: 1, kind: input, shape index: {}]
  %s2 = inlined_call_operand.vmem [shape: f32[128,128], index: 2, kind: input, shape index: {}]
  %s3 = inlined_call_operand.vmem [shape: f32[1,128], index: 3, kind: input, shape index: {}]
  %s4 = inlined_call_operand.vmem [shape: f32[1,128], index: 4, kind: input, shape index: {}]
  %s5 = inlined_call_operand.vmem [shape: f32[512,128], index: 5, kind: output, shape index: {}]
  %s6 = sld [smem:[#allocation0]]
  $region30: #{patch_expand2d.1} parent=0
    _
  %s8 = ssub.s32 1, %s6
  %s9 = scalar_select 0, %s8, %s6
  // Predicated region
  $region2: #{patch_expand2d.1} parent=0 // pred_check
    _
  $region3: #{patch_expand2d.1} parent=0 // pred_check_branch
    %11 = sbr.rel (0) target = $region5
  $region4: #{patch_expand2d.1} parent=0 // pred_region
    _
  $region5: #{patch_expand2d.1} parent=0 // pred_fallthru
    _
  // Predicated region
  $region6: #{patch_expand2d.1} parent=0 // pred_check
    _
  $region7: #{patch_expand2d.1} parent=0 // pred_check_branch
    %13 = sbr.rel (0) target = $region9
  $region8: #{patch_expand2d.1} parent=0 // pred_region
    _
  $region9: #{patch_expand2d.1} parent=0 // pred_fallthru
    _
  // Predicated region
  $region10: #{patch_expand2d.1} parent=0 // pred_check
    _
  $region11: #{patch_expand2d.1} parent=0 // pred_check_branch
    %15 = sbr.rel (0) target = $region13
  $region12: #{patch_expand2d.1} parent=0 // pred_region
    _
  $region13: #{patch_expand2d.1} parent=0 // pred_fallthru
    _
  // Predicated region
  $region14: #{patch_expand2d.1} parent=0 // pred_check
    _
  $region15: #{patch_expand2d.1} parent=0 // pred_check_branch
    %17 = sbr.rel (0) target = $region17
  $region16: #{patch_expand2d.1} parent=0 // pred_region
    _
  $region17: #{patch_expand2d.1} parent=0 // pred_fallthru
    _
  // Predicated region
  $region18: #{patch_expand2d.1} parent=0 // pred_check
    _
  $region19: #{patch_expand2d.1} parent=0 // pred_check_branch
    %19 = sbr.rel (0) target = $region21
  $region20: #{patch_expand2d.1} parent=0 // pred_region
    _
  $region21: #{patch_expand2d.1} parent=0 // pred_fallthru
    _
  %v21 = vld [vmem:[%s0] sm:$0xf]
  %v22 = vld [vmem:[%s0 + $0x4] sm:$0xf]
  %v23 = vld [vmem:[%s0 + $0x8] sm:$0xf]
  %v24 = vld [vmem:[%s0 + $0xc] sm:$0xf]
  %v25 = vld [vmem:[%s0 + $0x10] sm:$0xf]
  %v26 = vld [vmem:[%s0 + $0x14] sm:$0xf]
  %v27 = vld [vmem:[%s0 + $0x18] sm:$0xf]
  %v28 = vld [vmem:[%s0 + $0x1c] sm:$0xf]
  %v29 = vld [vmem:[%s0 + $0x20] sm:$0xf]
  %v30 = vld [vmem:[%s0 + $0x24] sm:$0xf]
  %v31 = vld [vmem:[%s0 + $0x28] sm:$0xf]
  %v32 = vld [vmem:[%s0 + $0x2c] sm:$0xf]
  %v33 = vld [vmem:[%s0 + $0x30] sm:$0xf]
  %v34 = vld [vmem:[%s0 + $0x34] sm:$0xf]
  %v35 = vld [vmem:[%s0 + $0x38] sm:$0xf]
  %v36 = vld [vmem:[%s0 + $0x3c] sm:$0xf]
  %v37 = vld [vmem:[%s0 + $0x40] sm:$0xf]
  %v38 = vld [vmem:[%s0 + $0x44] sm:$0xf]
  %v39 = vld [vmem:[%s0 + $0x48] sm:$0xf]
  %v40 = vld [vmem:[%s0 + $0x4c] sm:$0xf]
  %v41 = vld [vmem:[%s0 + $0x50] sm:$0xf]
  %v42 = vld [vmem:[%s0 + $0x54] sm:$0xf]
  %v43 = vld [vmem:[%s0 + $0x58] sm:$0xf]
  %v44 = vld [vmem:[%s0 + $0x5c] sm:$0xf]
  %v45 = vld [vmem:[%s0 + $0x60] sm:$0xf]
  %v46 = vld [vmem:[%s0 + $0x64] sm:$0xf]
  %v47 = vld [vmem:[%s0 + $0x68] sm:$0xf]
  %v48 = vld [vmem:[%s0 + $0x6c] sm:$0xf]
  %v49 = vld [vmem:[%s0 + $0x70] sm:$0xf]
  %v50 = vld [vmem:[%s0 + $0x74] sm:$0xf]
  %v51 = vld [vmem:[%s0 + $0x78] sm:$0xf]
  %v52 = vld [vmem:[%s0 + $0x7c] sm:$0xf]
  %v53 = vld [vmem:[%s0 + $0x80] sm:$0xf]
  %v54 = vld [vmem:[%s0 + $0x84] sm:$0xf]
  %v55 = vld [vmem:[%s0 + $0x88] sm:$0xf]
  %v56 = vld [vmem:[%s0 + $0x8c] sm:$0xf]
  %v57 = vld [vmem:[%s0 + $0x90] sm:$0xf]
  %v58 = vld [vmem:[%s0 + $0x94] sm:$0xf]
  %v59 = vld [vmem:[%s0 + $0x98] sm:$0xf]
  %v60 = vld [vmem:[%s0 + $0x9c] sm:$0xf]
  %v61 = vld [vmem:[%s0 + $0xa0] sm:$0xf]
  %v62 = vld [vmem:[%s0 + $0xa4] sm:$0xf]
  %v63 = vld [vmem:[%s0 + $0xa8] sm:$0xf]
  %v64 = vld [vmem:[%s0 + $0xac] sm:$0xf]
  %v65 = vld [vmem:[%s0 + $0xb0] sm:$0xf]
  %v66 = vld [vmem:[%s0 + $0xb4] sm:$0xf]
  %v67 = vld [vmem:[%s0 + $0xb8] sm:$0xf]
  %v68 = vld [vmem:[%s0 + $0xbc] sm:$0xf]
  %v69 = vld [vmem:[%s0 + $0xc0] sm:$0xf]
  %v70 = vld [vmem:[%s0 + $0xc4] sm:$0xf]
  %v71 = vld [vmem:[%s0 + $0xc8] sm:$0xf]
  %v72 = vld [vmem:[%s0 + $0xcc] sm:$0xf]
  %v73 = vld [vmem:[%s0 + $0xd0] sm:$0xf]
  %v74 = vld [vmem:[%s0 + $0xd4] sm:$0xf]
  %v75 = vld [vmem:[%s0 + $0xd8] sm:$0xf]
  %v76 = vld [vmem:[%s0 + $0xdc] sm:$0xf]
  %v77 = vld [vmem:[%s0 + $0xe0] sm:$0xf]
  %v78 = vld [vmem:[%s0 + $0xe4] sm:$0xf]
  %v79 = vld [vmem:[%s0 + $0xe8] sm:$0xf]
  %v80 = vld [vmem:[%s0 + $0xec] sm:$0xf]
  %v81 = vld [vmem:[%s0 + $0xf0] sm:$0xf]
  %v82 = vld [vmem:[%s0 + $0xf4] sm:$0xf]
  %v83 = vld [vmem:[%s0 + $0xf8] sm:$0xf]
  %v84 = vld [vmem:[%s0 + $0xfc] sm:$0xf]
  %v85 = vld [vmem:[%s1] sm:$0xf]
  %v86 = vld [vmem:[%s1 + $0x4] sm:$0xf]
  %v87 = vld [vmem:[%s1 + $0x8] sm:$0xf]
  %v88 = vld [vmem:[%s1 + $0xc] sm:$0xf]
  %v89 = vld [vmem:[%s1 + $0x10] sm:$0xf]
  %v90 = vld [vmem:[%s1 + $0x14] sm:$0xf]
  %v91 = vld [vmem:[%s1 + $0x18] sm:$0xf]
  %v92 = vld [vmem:[%s1 + $0x1c] sm:$0xf]
  %v157 = vunpack.c.l.b16 %v21
  %v158 = vunpack.c.l.b16 %v22
  %v159 = vunpack.c.l.b16 %v23
  %v160 = vunpack.c.l.b16 %v24
  %v161 = vunpack.c.l.b16 %v25
  %v162 = vunpack.c.l.b16 %v26
  %v163 = vunpack.c.l.b16 %v27
  %v164 = vunpack.c.l.b16 %v28
  %v165 = vunpack.c.l.b16 %v29
  %v166 = vunpack.c.l.b16 %v30
  %v167 = vunpack.c.l.b16 %v31
  %v168 = vunpack.c.l.b16 %v32
  %v169 = vunpack.c.l.b16 %v33
  %v170 = vunpack.c.l.b16 %v34
  %v171 = vunpack.c.l.b16 %v35
  %v172 = vunpack.c.l.b16 %v36
  %v173 = vunpack.c.l.b16 %v37
  %v174 = vunpack.c.l.b16 %v38
  %v175 = vunpack.c.l.b16 %v39
  %v176 = vunpack.c.l.b16 %v40
  %v177 = vunpack.c.l.b16 %v41
  %v178 = vunpack.c.l.b16 %v42
  %v179 = vunpack.c.l.b16 %v43
  %v180 = vunpack.c.l.b16 %v44
  %v181 = vunpack.c.l.b16 %v45
  %v182 = vunpack.c.l.b16 %v46
  %v183 = vunpack.c.l.b16 %v47
  %v184 = vunpack.c.l.b16 %v48
  %v185 = vunpack.c.l.b16 %v49
  %v186 = vunpack.c.l.b16 %v50
  %v187 = vunpack.c.l.b16 %v51
  %v188 = vunpack.c.l.b16 %v52
  %v189 = vunpack.c.l.b16 %v53
  %v190 = vunpack.c.l.b16 %v54
  %v191 = vunpack.c.l.b16 %v55
  %v192 = vunpack.c.l.b16 %v56
  %v193 = vunpack.c.l.b16 %v57
  %v194 = vunpack.c.l.b16 %v58
  %v195 = vunpack.c.l.b16 %v59
  %v196 = vunpack.c.l.b16 %v60
  %v197 = vunpack.c.l.b16 %v61
  %v198 = vunpack.c.l.b16 %v62
  %v199 = vunpack.c.l.b16 %v63
  %v200 = vunpack.c.l.b16 %v64
  %v201 = vunpack.c.l.b16 %v65
  %v202 = vunpack.c.l.b16 %v66
  %v203 = vunpack.c.l.b16 %v67
  %v204 = vunpack.c.l.b16 %v68
  %v205 = vunpack.c.l.b16 %v69
  %v206 = vunpack.c.l.b16 %v70
  %v207 = vunpack.c.l.b16 %v71
  %v208 = vunpack.c.l.b16 %v72
  %v209 = vunpack.c.l.b16 %v73
  %v210 = vunpack.c.l.b16 %v74
  %v211 = vunpack.c.l.b16 %v75
  %v212 = vunpack.c.l.b16 %v76
  %v213 = vunpack.c.l.b16 %v77
  %v214 = vunpack.c.l.b16 %v78
  %v215 = vunpack.c.l.b16 %v79
  %v216 = vunpack.c.l.b16 %v80
  %v217 = vunpack.c.l.b16 %v81
  %v218 = vunpack.c.l.b16 %v82
  %v219 = vunpack.c.l.b16 %v83
  %v220 = vunpack.c.l.b16 %v84
  %v221 = vpack.c.b16 %v158, %v157
  %v222 = vpack.c.b16 %v160, %v159
  %v223 = vpack.c.b16 %v162, %v161
  %v224 = vpack.c.b16 %v164, %v163
  %v225 = vpack.c.b16 %v166, %v165
  %v226 = vpack.c.b16 %v168, %v167
  %v227 = vpack.c.b16 %v170, %v169
  %v228 = vpack.c.b16 %v172, %v171
  %v229 = vpack.c.b16 %v174, %v173
  %v230 = vpack.c.b16 %v176, %v175
  %v231 = vpack.c.b16 %v178, %v177
  %v232 = vpack.c.b16 %v180, %v179
  %v233 = vpack.c.b16 %v182, %v181
  %v234 = vpack.c.b16 %v184, %v183
  %v235 = vpack.c.b16 %v186, %v185
  %v236 = vpack.c.b16 %v188, %v187
  %v237 = vpack.c.b16 %v190, %v189
  %v238 = vpack.c.b16 %v192, %v191
  %v239 = vpack.c.b16 %v194, %v193
  %v240 = vpack.c.b16 %v196, %v195
  %v241 = vpack.c.b16 %v198, %v197
  %v242 = vpack.c.b16 %v200, %v199
  %v243 = vpack.c.b16 %v202, %v201
  %v244 = vpack.c.b16 %v204, %v203
  %v245 = vpack.c.b16 %v206, %v205
  %v246 = vpack.c.b16 %v208, %v207
  %v247 = vpack.c.b16 %v210, %v209
  %v248 = vpack.c.b16 %v212, %v211
  %v249 = vpack.c.b16 %v214, %v213
  %v250 = vpack.c.b16 %v216, %v215
  %v251 = vpack.c.b16 %v218, %v217
  %v252 = vpack.c.b16 %v220, %v219
  %v261 = vunpack.c.l.b16 %v85
  %v262 = vunpack.c.l.b16 %v86
  %v263 = vunpack.c.l.b16 %v87
  %v264 = vunpack.c.l.b16 %v88
  %v265 = vunpack.c.l.b16 %v89
  %v266 = vunpack.c.l.b16 %v90
  %v267 = vunpack.c.l.b16 %v91
  %v268 = vunpack.c.l.b16 %v92
  %v269 = vpack.c.b16 %v262, %v261
  %v270 = vpack.c.b16 %v264, %v263
  %v271 = vpack.c.b16 %v266, %v265
  %v272 = vpack.c.b16 %v268, %v267
  %vm277 = vcmask 523264
  %v279 = vsel %vm277, %v221, 0
  %v282 = vsel %vm277, %v222, 0
  %v285 = vsel %vm277, %v223, 0
  %v288 = vsel %vm277, %v224, 0
  %v291 = vsel %vm277, %v225, 0
  %v294 = vsel %vm277, %v226, 0
  %v297 = vsel %vm277, %v227, 0
  %v300 = vsel %vm277, %v228, 0
  %v303 = vsel %vm277, %v229, 0
  %v306 = vsel %vm277, %v230, 0
  %v309 = vsel %vm277, %v231, 0
  %v312 = vsel %vm277, %v232, 0
  %v315 = vsel %vm277, %v233, 0
  %v318 = vsel %vm277, %v234, 0
  %v321 = vsel %vm277, %v235, 0
  %v324 = vsel %vm277, %v236, 0
  %v327 = vsel %vm277, %v237, 0
  %v330 = vsel %vm277, %v238, 0
  %v333 = vsel %vm277, %v239, 0
  %v336 = vsel %vm277, %v240, 0
  %v339 = vsel %vm277, %v241, 0
  %v342 = vsel %vm277, %v242, 0
  %v345 = vsel %vm277, %v243, 0
  %v348 = vsel %vm277, %v244, 0
  %v351 = vsel %vm277, %v245, 0
  %v354 = vsel %vm277, %v246, 0
  %v357 = vsel %vm277, %v247, 0
  %v360 = vsel %vm277, %v248, 0
  %v363 = vsel %vm277, %v249, 0
  %v366 = vsel %vm277, %v250, 0
  %v369 = vsel %vm277, %v251, 0
  %v372 = vsel %vm277, %v252, 0
  %374 = vmatprep.subr.bf16.mxu0 0
  %375 = vmatpush1.bf16.msra.mxu0 %v269
  %376 = vmatprep.subr.bf16.mxu0 0
  %377 = vmatpush1.bf16.msra.mxu0 %v270
  %378 = vmatprep.subr.bf16.mxu0 0
  %379 = vmatpush1.bf16.msra.mxu0 %v271
  %380 = vmatprep.subr.bf16.mxu0 0
  %381 = vmatpush1.bf16.msra.mxu0 %v272
  %382 = vmatprep.subr.bf16.mxu0 0
  %383 = vmatpush1.bf16.msra.mxu0 0
  %384 = vmatprep.subr.bf16.mxu0 0
  %385 = vmatpush1.bf16.msra.mxu0 0
  %386 = vmatprep.subr.bf16.mxu0 0
  %387 = vmatpush1.bf16.msra.mxu0 0
  %388 = vmatprep.subr.bf16.mxu0 0
  %389 = vmatpush1.bf16.msra.mxu0 0
  %390 = vmatprep.subr.bf16.mxu0 0
  %391 = vmatpush1.bf16.msra.mxu0 0
  %392 = vmatprep.subr.bf16.mxu0 0
  %393 = vmatpush1.bf16.msra.mxu0 0
  %394 = vmatprep.subr.bf16.mxu0 0
  %395 = vmatpush1.bf16.msra.mxu0 0
  %396 = vmatprep.subr.bf16.mxu0 0
  %397 = vmatpush1.bf16.msra.mxu0 0
  %398 = vmatprep.subr.bf16.mxu0 0
  %399 = vmatpush1.bf16.msra.mxu0 0
  %400 = vmatprep.subr.bf16.mxu0 0
  %401 = vmatpush1.bf16.msra.mxu0 0
  %402 = vmatprep.subr.bf16.mxu0 0
  %403 = vmatpush1.bf16.msra.mxu0 0
  %404 = vmatprep.subr.bf16.mxu0 0
  %405 = vmatpush1.bf16.msra.mxu0 0
  %406 = vmatprep.mubr.bf16.mxu0 0
  %407 = vmatmul.mubr.bf16.gmra.mrb[0].mxu0 %v279
  %v408 = vpop.f32.mrb[0].mxu0
  %v409 = vadd.f32 0.0, %v408
  %v410 = vpop.f32.mrb[0].mxu0
  %v411 = vpop.f32.mrb[0].mxu0
  %v412 = vadd.f32 0.0, %v411
  %v413 = vpop.f32.mrb[0].mxu0
  %414 = vmatprep.mubr.bf16.mxu0 0
  %415 = vmatmul.mubr.bf16.gmra.mrb[0].mxu0 %v282
  %v416 = vpop.f32.mrb[0].mxu0
  %v417 = vadd.f32 0.0, %v416
  %v418 = vpop.f32.mrb[0].mxu0
  %v419 = vpop.f32.mrb[0].mxu0
  %v420 = vadd.f32 0.0, %v419
  %v421 = vpop.f32.mrb[0].mxu0
  %422 = vmatprep.mubr.bf16.mxu0 0
  %423 = vmatmul.mubr.bf16.gmra.mrb[0].mxu0 %v285
  %v424 = vpop.f32.mrb[0].mxu0
  %v425 = vadd.f32 0.0, %v424
  %v426 = vpop.f32.mrb[0].mxu0
  %v427 = vpop.f32.mrb[0].mxu0
  %v428 = vadd.f32 0.0, %v427
  %v429 = vpop.f32.mrb[0].mxu0
  %430 = vmatprep.mubr.bf16.mxu0 0
  %431 = vmatmul.mubr.bf16.gmra.mrb[0].mxu0 %v288
  %v432 = vpop.f32.mrb[0].mxu0
  %v433 = vadd.f32 0.0, %v432
  %v434 = vpop.f32.mrb[0].mxu0
  %v435 = vpop.f32.mrb[0].mxu0
  %v436 = vadd.f32 0.0, %v435
  %v437 = vpop.f32.mrb[0].mxu0
  %438 = vmatprep.mubr.bf16.mxu0 0
  %439 = vmatmul.mubr.bf16.gmra.mrb[0].mxu0 %v291
  %v440 = vpop.f32.mrb[0].mxu0
  %v441 = vadd.f32 0.0, %v440
  %v442 = vpop.f32.mrb[0].mxu0
  %v443 = vpop.f32.mrb[0].mxu0
  %v444 = vadd.f32 0.0, %v443
  %v445 = vpop.f32.mrb[0].mxu0
  %446 = vmatprep.mubr.bf16.mxu0 0
  %447 = vmatmul.mubr.bf16.gmra.mrb[0].mxu0 %v294
  %v448 = vpop.f32.mrb[0].mxu0
  %v449 = vadd.f32 0.0, %v448
  %v450 = vpop.f32.mrb[0].mxu0
  %v451 = vpop.f32.mrb[0].mxu0
  %v452 = vadd.f32 0.0, %v451
  %v453 = vpop.f32.mrb[0].mxu0
  %454 = vmatprep.mubr.bf16.mxu0 0
  %455 = vmatmul.mubr.bf16.gmra.mrb[0].mxu0 %v297
  %v456 = vpop.f32.mrb[0].mxu0
  %v457 = vadd.f32 0.0, %v456
  %v458 = vpop.f32.mrb[0].mxu0
  %v459 = vpop.f32.mrb[0].mxu0
  %v460 = vadd.f32 0.0, %v459
  %v461 = vpop.f32.mrb[0].mxu0
  %462 = vmatprep.mubr.bf16.mxu0 0
  %463 = vmatmul.mubr.bf16.gmra.mrb[0].mxu0 %v300
  %v464 = vpop.f32.mrb[0].mxu0
  %v465 = vadd.f32 0.0, %v464
  %v466 = vpop.f32.mrb[0].mxu0
  %v467 = vpop.f32.mrb[0].mxu0
  %v468 = vadd.f32 0.0, %v467
  %v469 = vpop.f32.mrb[0].mxu0
  %470 = vmatprep.mubr.bf16.mxu0 0
  %471 = vmatmul.mubr.bf16.gmra.mrb[0].mxu0 %v303
  %v472 = vpop.f32.mrb[0].mxu0
  %v473 = vadd.f32 0.0, %v472
  %v474 = vpop.f32.mrb[0].mxu0
  %v475 = vpop.f32.mrb[0].mxu0
  %v476 = vadd.f32 0.0, %v475
  %v477 = vpop.f32.mrb[0].mxu0
  %478 = vmatprep.mubr.bf16.mxu0 0
  %479 = vmatmul.mubr.bf16.gmra.mrb[0].mxu0 %v306
  %v480 = vpop.f32.mrb[0].mxu0
  %v481 = vadd.f32 0.0, %v480
  %v482 = vpop.f32.mrb[0].mxu0
  %v483 = vpop.f32.mrb[0].mxu0
  %v484 = vadd.f32 0.0, %v483
  %v485 = vpop.f32.mrb[0].mxu0
  %486 = vmatprep.mubr.bf16.mxu0 0
  %487 = vmatmul.mubr.bf16.gmra.mrb[0].mxu0 %v309
  %v488 = vpop.f32.mrb[0].mxu0
  %v489 = vadd.f32 0.0, %v488
  %v490 = vpop.f32.mrb[0].mxu0
  %v491 = vpop.f32.mrb[0].mxu0
  %v492 = vadd.f32 0.0, %v491
  %v493 = vpop.f32.mrb[0].mxu0
  %494 = vmatprep.mubr.bf16.mxu0 0
  %495 = vmatmul.mubr.bf16.gmra.mrb[0].mxu0 %v312
  %v496 = vpop.f32.mrb[0].mxu0
  %v497 = vadd.f32 0.0, %v496
  %v498 = vpop.f32.mrb[0].mxu0
  %v499 = vpop.f32.mrb[0].mxu0
  %v500 = vadd.f32 0.0, %v499
  %v501 = vpop.f32.mrb[0].mxu0
  %502 = vmatprep.mubr.bf16.mxu0 0
  %503 = vmatmul.mubr.bf16.gmra.mrb[0].mxu0 %v315
  %v504 = vpop.f32.mrb[0].mxu0
  %v505 = vadd.f32 0.0, %v504
  %v506 = vpop.f32.mrb[0].mxu0
  %v507 = vpop.f32.mrb[0].mxu0
  %v508 = vadd.f32 0.0, %v507
  %v509 = vpop.f32.mrb[0].mxu0
  %510 = vmatprep.mubr.bf16.mxu0 0
  %511 = vmatmul.mubr.bf16.gmra.mrb[0].mxu0 %v318
  %v512 = vpop.f32.mrb[0].mxu0
  %v513 = vadd.f32 0.0, %v512
  %v514 = vpop.f32.mrb[0].mxu0
  %v515 = vpop.f32.mrb[0].mxu0
  %v516 = vadd.f32 0.0, %v515
  %v517 = vpop.f32.mrb[0].mxu0
  %518 = vmatprep.mubr.bf16.mxu0 0
  %519 = vmatmul.mubr.bf16.gmra.mrb[0].mxu0 %v321
  %v520 = vpop.f32.mrb[0].mxu0
  %v521 = vadd.f32 0.0, %v520
  %v522 = vpop.f32.mrb[0].mxu0
  %v523 = vpop.f32.mrb[0].mxu0
  %v524 = vadd.f32 0.0, %v523
  %v525 = vpop.f32.mrb[0].mxu0
  %526 = vmatprep.mubr.bf16.mxu0 0
  %527 = vmatmul.mubr.bf16.gmra.mrb[0].mxu0 %v324
  %v528 = vpop.f32.mrb[0].mxu0
  %v529 = vadd.f32 0.0, %v528
  %v530 = vpop.f32.mrb[0].mxu0
  %v531 = vpop.f32.mrb[0].mxu0
  %v532 = vadd.f32 0.0, %v531
  %v533 = vpop.f32.mrb[0].mxu0
  %534 = vmatprep.mubr.bf16.mxu0 0
  %535 = vmatmul.mubr.bf16.gmra.mrb[0].mxu0 %v327
  %v536 = vpop.f32.mrb[0].mxu0
  %v537 = vadd.f32 0.0, %v536
  %v538 = vpop.f32.mrb[0].mxu0
  %v539 = vpop.f32.mrb[0].mxu0
  %v540 = vadd.f32 0.0, %v539
  %v541 = vpop.f32.mrb[0].mxu0
  %542 = vmatprep.mubr.bf16.mxu0 0
  %543 = vmatmul.mubr.bf16.gmra.mrb[0].mxu0 %v330
  %v544 = vpop.f32.mrb[0].mxu0
  %v545 = vadd.f32 0.0, %v544
  %v546 = vpop.f32.mrb[0].mxu0
  %v547 = vpop.f32.mrb[0].mxu0
  %v548 = vadd.f32 0.0, %v547
  %v549 = vpop.f32.mrb[0].mxu0
  %550 = vmatprep.mubr.bf16.mxu0 0
  %551 = vmatmul.mubr.bf16.gmra.mrb[0].mxu0 %v333
  %v552 = vpop.f32.mrb[0].mxu0
  %v553 = vadd.f32 0.0, %v552
  %v554 = vpop.f32.mrb[0].mxu0
  %v555 = vpop.f32.mrb[0].mxu0
  %v556 = vadd.f32 0.0, %v555
  %v557 = vpop.f32.mrb[0].mxu0
  %558 = vmatprep.mubr.bf16.mxu0 0
  %559 = vmatmul.mubr.bf16.gmra.mrb[0].mxu0 %v336
  %v560 = vpop.f32.mrb[0].mxu0
  %v561 = vadd.f32 0.0, %v560
  %v562 = vpop.f32.mrb[0].mxu0
  %v563 = vpop.f32.mrb[0].mxu0
  %v564 = vadd.f32 0.0, %v563
  %v565 = vpop.f32.mrb[0].mxu0
  %566 = vmatprep.mubr.bf16.mxu0 0
  %567 = vmatmul.mubr.bf16.gmra.mrb[0].mxu0 %v339
  %v568 = vpop.f32.mrb[0].mxu0
  %v569 = vadd.f32 0.0, %v568
  %v570 = vpop.f32.mrb[0].mxu0
  %v571 = vpop.f32.mrb[0].mxu0
  %v572 = vadd.f32 0.0, %v571
  %v573 = vpop.f32.mrb[0].mxu0
  %574 = vmatprep.mubr.bf16.mxu0 0
  %575 = vmatmul.mubr.bf16.gmra.mrb[0].mxu0 %v342
  %v576 = vpop.f32.mrb[0].mxu0
  %v577 = vadd.f32 0.0, %v576
  %v578 = vpop.f32.mrb[0].mxu0
  %v579 = vpop.f32.mrb[0].mxu0
  %v580 = vadd.f32 0.0, %v579
  %v581 = vpop.f32.mrb[0].mxu0
  %582 = vmatprep.mubr.bf16.mxu0 0
  %583 = vmatmul.mubr.bf16.gmra.mrb[0].mxu0 %v345
  %v584 = vpop.f32.mrb[0].mxu0
  %v585 = vadd.f32 0.0, %v584
  %v586 = vpop.f32.mrb[0].mxu0
  %v587 = vpop.f32.mrb[0].mxu0
  %v588 = vadd.f32 0.0, %v587
  %v589 = vpop.f32.mrb[0].mxu0
  %590 = vmatprep.mubr.bf16.mxu0 0
  %591 = vmatmul.mubr.bf16.gmra.mrb[0].mxu0 %v348
  %v592 = vpop.f32.mrb[0].mxu0
  %v593 = vadd.f32 0.0, %v592
  %v594 = vpop.f32.mrb[0].mxu0
  %v595 = vpop.f32.mrb[0].mxu0
  %v596 = vadd.f32 0.0, %v595
  %v597 = vpop.f32.mrb[0].mxu0
  %598 = vmatprep.mubr.bf16.mxu0 0
  %599 = vmatmul.mubr.bf16.gmra.mrb[0].mxu0 %v351
  %v600 = vpop.f32.mrb[0].mxu0
  %v601 = vadd.f32 0.0, %v600
  %v602 = vpop.f32.mrb[0].mxu0
  %v603 = vpop.f32.mrb[0].mxu0
  %v604 = vadd.f32 0.0, %v603
  %v605 = vpop.f32.mrb[0].mxu0
  %606 = vmatprep.mubr.bf16.mxu0 0
  %607 = vmatmul.mubr.bf16.gmra.mrb[0].mxu0 %v354
  %v608 = vpop.f32.mrb[0].mxu0
  %v609 = vadd.f32 0.0, %v608
  %v610 = vpop.f32.mrb[0].mxu0
  %v611 = vpop.f32.mrb[0].mxu0
  %v612 = vadd.f32 0.0, %v611
  %v613 = vpop.f32.mrb[0].mxu0
  %614 = vmatprep.mubr.bf16.mxu0 0
  %615 = vmatmul.mubr.bf16.gmra.mrb[0].mxu0 %v357
  %v616 = vpop.f32.mrb[0].mxu0
  %v617 = vadd.f32 0.0, %v616
  %v618 = vpop.f32.mrb[0].mxu0
  %v619 = vpop.f32.mrb[0].mxu0
  %v620 = vadd.f32 0.0, %v619
  %v621 = vpop.f32.mrb[0].mxu0
  %622 = vmatprep.mubr.bf16.mxu0 0
  %623 = vmatmul.mubr.bf16.gmra.mrb[0].mxu0 %v360
  %v624 = vpop.f32.mrb[0].mxu0
  %v625 = vadd.f32 0.0, %v624
  %v626 = vpop.f32.mrb[0].mxu0
  %v627 = vpop.f32.mrb[0].mxu0
  %v628 = vadd.f32 0.0, %v627
  %v629 = vpop.f32.mrb[0].mxu0
  %630 = vmatprep.mubr.bf16.mxu0 0
  %631 = vmatmul.mubr.bf16.gmra.mrb[0].mxu0 %v363
  %v632 = vpop.f32.mrb[0].mxu0
  %v633 = vadd.f32 0.0, %v632
  %v634 = vpop.f32.mrb[0].mxu0
  %v635 = vpop.f32.mrb[0].mxu0
  %v636 = vadd.f32 0.0, %v635
  %v637 = vpop.f32.mrb[0].mxu0
  %638 = vmatprep.mubr.bf16.mxu0 0
  %639 = vmatmul.mubr.bf16.gmra.mrb[0].mxu0 %v366
  %v640 = vpop.f32.mrb[0].mxu0
  %v641 = vadd.f32 0.0, %v640
  %v642 = vpop.f32.mrb[0].mxu0
  %v643 = vpop.f32.mrb[0].mxu0
  %v644 = vadd.f32 0.0, %v643
  %v645 = vpop.f32.mrb[0].mxu0
  %646 = vmatprep.mubr.bf16.mxu0 0
  %647 = vmatmul.mubr.bf16.gmra.mrb[0].mxu0 %v369
  %v648 = vpop.f32.mrb[0].mxu0
  %v649 = vadd.f32 0.0, %v648
  %v650 = vpop.f32.mrb[0].mxu0
  %v651 = vpop.f32.mrb[0].mxu0
  %v652 = vadd.f32 0.0, %v651
  %v653 = vpop.f32.mrb[0].mxu0
  %654 = vmatprep.mubr.bf16.mxu0 0
  %655 = vmatmul.mubr.bf16.gmra.mrb[0].mxu0 %v372
  %v656 = vpop.f32.mrb[0].mxu0
  %v657 = vadd.f32 0.0, %v656
  %v658 = vpop.f32.mrb[0].mxu0
  %v659 = vpop.f32.mrb[0].mxu0
  %v660 = vadd.f32 0.0, %v659
  %v661 = vpop.f32.mrb[0].mxu0
  %662 = vdwg.mxu0
  %v663 = vld [vmem:[%s2] sm:$0xff]
  %v664 = vld [vmem:[%s2 + $0x8] sm:$0xff]
  %v665 = vld [vmem:[%s2 + $0x10] sm:$0xff]
  %v666 = vld [vmem:[%s2 + $0x18] sm:$0xff]
  %v667 = vld [vmem:[%s2 + $0x20] sm:$0xff]
  %v668 = vld [vmem:[%s2 + $0x28] sm:$0xff]
  %v669 = vld [vmem:[%s2 + $0x30] sm:$0xff]
  %v670 = vld [vmem:[%s2 + $0x38] sm:$0xff]
  %v671 = vld [vmem:[%s2 + $0x40] sm:$0xff]
  %v672 = vld [vmem:[%s2 + $0x48] sm:$0xff]
  %v673 = vld [vmem:[%s2 + $0x50] sm:$0xff]
  %v674 = vld [vmem:[%s2 + $0x58] sm:$0xff]
  %v675 = vld [vmem:[%s2 + $0x60] sm:$0xff]
  %v676 = vld [vmem:[%s2 + $0x68] sm:$0xff]
  %v677 = vld [vmem:[%s2 + $0x70] sm:$0xff]
  %v678 = vld [vmem:[%s2 + $0x78] sm:$0xff]
  %679 = vmatprep.subr.mxu0 0.0
  %680 = vmatpush1.msra.mxu0 %v663
  %681 = vmatprep.subr.mxu0 0.0
  %682 = vmatpush1.msra.mxu0 %v664
  %683 = vmatprep.subr.mxu0 0.0
  %684 = vmatpush1.msra.mxu0 %v665
  %685 = vmatprep.subr.mxu0 0.0
  %686 = vmatpush1.msra.mxu0 %v666
  %687 = vmatprep.subr.mxu0 0.0
  %688 = vmatpush1.msra.mxu0 %v667
  %689 = vmatprep.subr.mxu0 0.0
  %690 = vmatpush1.msra.mxu0 %v668
  %691 = vmatprep.subr.mxu0 0.0
  %692 = vmatpush1.msra.mxu0 %v669
  %693 = vmatprep.subr.mxu0 0.0
  %694 = vmatpush1.msra.mxu0 %v670
  %695 = vmatprep.subr.mxu0 0.0
  %696 = vmatpush1.msra.mxu0 %v671
  %697 = vmatprep.subr.mxu0 0.0
  %698 = vmatpush1.msra.mxu0 %v672
  %699 = vmatprep.subr.mxu0 0.0
  %700 = vmatpush1.msra.mxu0 %v673
  %701 = vmatprep.subr.mxu0 0.0
  %702 = vmatpush1.msra.mxu0 %v674
  %703 = vmatprep.subr.mxu0 0.0
  %704 = vmatpush1.msra.mxu0 %v675
  %705 = vmatprep.subr.mxu0 0.0
  %706 = vmatpush1.msra.mxu0 %v676
  %707 = vmatprep.subr.mxu0 0.0
  %708 = vmatpush1.msra.mxu0 %v677
  %709 = vmatprep.subr.mxu0 0.0
  %710 = vmatpush1.msra.mxu0 %v678
  %711 = vmatprep.subr.mxu0 0.0
  %712 = vmatpush1.msra.mxu0 0.0
  %713 = vmatprep.subr.mxu0 0.0
  %714 = vmatpush1.msra.mxu0 0.0
  %715 = vmatprep.subr.mxu0 0.0
  %716 = vmatpush1.msra.mxu0 0.0
  %717 = vmatprep.subr.mxu0 0.0
  %718 = vmatpush1.msra.mxu0 0.0
  %719 = vmatprep.subr.mxu0 0.0
  %720 = vmatpush1.msra.mxu0 0.0
  %721 = vmatprep.subr.mxu0 0.0
  %722 = vmatpush1.msra.mxu0 0.0
  %723 = vmatprep.subr.mxu0 0.0
  %724 = vmatpush1.msra.mxu0 0.0
  %725 = vmatprep.subr.mxu0 0.0
  %726 = vmatpush1.msra.mxu0 0.0
  %727 = vmatprep.subr.mxu0 0.0
  %728 = vmatpush1.msra.mxu0 0.0
  %729 = vmatprep.subr.mxu0 0.0
  %730 = vmatpush1.msra.mxu0 0.0
  %731 = vmatprep.subr.mxu0 0.0
  %732 = vmatpush1.msra.mxu0 0.0
  %733 = vmatprep.subr.mxu0 0.0
  %734 = vmatpush1.msra.mxu0 0.0
  %735 = vmatprep.subr.mxu0 0.0
  %736 = vmatpush1.msra.mxu0 0.0
  %737 = vmatprep.subr.mxu0 0.0
  %738 = vmatpush1.msra.mxu0 0.0
  %739 = vmatprep.subr.mxu0 0.0
  %740 = vmatpush1.msra.mxu0 0.0
  %741 = vmatprep.subr.mxu0 0.0
  %742 = vmatpush1.msra.mxu0 0.0
  %743 = vmatprep.mubr.f32.mxu0 0.0
  %744 = vmatmul.mubr.f32.gmra.mrb[0].mxu0 %v409
  %v745 = vpop.f32.mrb[0].mxu0
  %v746 = vadd.f32 0.0, %v745
  %v747 = vpop.f32.mrb[0].mxu0
  %748 = vmatprep.mubr.f32.mxu0 0.0
  %749 = vmatmul.mubr.f32.gmra.mrb[0].mxu0 %v412
  %v750 = vpop.f32.mrb[0].mxu0
  %v751 = vadd.f32 0.0, %v750
  %v752 = vpop.f32.mrb[0].mxu0
  %753 = vmatprep.mubr.f32.mxu0 0.0
  %754 = vmatmul.mubr.f32.gmra.mrb[0].mxu0 %v417
  %v755 = vpop.f32.mrb[0].mxu0
  %v756 = vadd.f32 0.0, %v755
  %v757 = vpop.f32.mrb[0].mxu0
  %758 = vmatprep.mubr.f32.mxu0 0.0
  %759 = vmatmul.mubr.f32.gmra.mrb[0].mxu0 %v420
  %v760 = vpop.f32.mrb[0].mxu0
  %v761 = vadd.f32 0.0, %v760
  %v762 = vpop.f32.mrb[0].mxu0
  %763 = vmatprep.mubr.f32.mxu0 0.0
  %764 = vmatmul.mubr.f32.gmra.mrb[0].mxu0 %v425
  %v765 = vpop.f32.mrb[0].mxu0
  %v766 = vadd.f32 0.0, %v765
  %v767 = vpop.f32.mrb[0].mxu0
  %768 = vmatprep.mubr.f32.mxu0 0.0
  %769 = vmatmul.mubr.f32.gmra.mrb[0].mxu0 %v428
  %v770 = vpop.f32.mrb[0].mxu0
  %v771 = vadd.f32 0.0, %v770
  %v772 = vpop.f32.mrb[0].mxu0
  %773 = vmatprep.mubr.f32.mxu0 0.0
  %774 = vmatmul.mubr.f32.gmra.mrb[0].mxu0 %v433
  %v775 = vpop.f32.mrb[0].mxu0
  %v776 = vadd.f32 0.0, %v775
  %v777 = vpop.f32.mrb[0].mxu0
  %778 = vmatprep.mubr.f32.mxu0 0.0
  %779 = vmatmul.mubr.f32.gmra.mrb[0].mxu0 %v436
  %v780 = vpop.f32.mrb[0].mxu0
  %v781 = vadd.f32 0.0, %v780
  %v782 = vpop.f32.mrb[0].mxu0
  %783 = vmatprep.mubr.f32.mxu0 0.0
  %784 = vmatmul.mubr.f32.gmra.mrb[0].mxu0 %v441
  %v785 = vpop.f32.mrb[0].mxu0
  %v786 = vadd.f32 0.0, %v785
  %v787 = vpop.f32.mrb[0].mxu0
  %788 = vmatprep.mubr.f32.mxu0 0.0
  %789 = vmatmul.mubr.f32.gmra.mrb[0].mxu0 %v444
  %v790 = vpop.f32.mrb[0].mxu0
  %v791 = vadd.f32 0.0, %v790
  %v792 = vpop.f32.mrb[0].mxu0
  %793 = vmatprep.mubr.f32.mxu0 0.0
  %794 = vmatmul.mubr.f32.gmra.mrb[0].mxu0 %v449
  %v795 = vpop.f32.mrb[0].mxu0
  %v796 = vadd.f32 0.0, %v795
  %v797 = vpop.f32.mrb[0].mxu0
  %798 = vmatprep.mubr.f32.mxu0 0.0
  %799 = vmatmul.mubr.f32.gmra.mrb[0].mxu0 %v452
  %v800 = vpop.f32.mrb[0].mxu0
  %v801 = vadd.f32 0.0, %v800
  %v802 = vpop.f32.mrb[0].mxu0
  %803 = vmatprep.mubr.f32.mxu0 0.0
  %804 = vmatmul.mubr.f32.gmra.mrb[0].mxu0 %v457
  %v805 = vpop.f32.mrb[0].mxu0
  %v806 = vadd.f32 0.0, %v805
  %v807 = vpop.f32.mrb[0].mxu0
  %808 = vmatprep.mubr.f32.mxu0 0.0
  %809 = vmatmul.mubr.f32.gmra.mrb[0].mxu0 %v460
  %v810 = vpop.f32.mrb[0].mxu0
  %v811 = vadd.f32 0.0, %v810
  %v812 = vpop.f32.mrb[0].mxu0
  %813 = vmatprep.mubr.f32.mxu0 0.0
  %814 = vmatmul.mubr.f32.gmra.mrb[0].mxu0 %v465
  %v815 = vpop.f32.mrb[0].mxu0
  %v816 = vadd.f32 0.0, %v815
  %v817 = vpop.f32.mrb[0].mxu0
  %818 = vmatprep.mubr.f32.mxu0 0.0
  %819 = vmatmul.mubr.f32.gmra.mrb[0].mxu0 %v468
  %v820 = vpop.f32.mrb[0].mxu0
  %v821 = vadd.f32 0.0, %v820
  %v822 = vpop.f32.mrb[0].mxu0
  %823 = vmatprep.mubr.f32.mxu0 0.0
  %824 = vmatmul.mubr.f32.gmra.mrb[0].mxu0 %v473
  %v825 = vpop.f32.mrb[0].mxu0
  %v826 = vadd.f32 0.0, %v825
  %v827 = vpop.f32.mrb[0].mxu0
  %828 = vmatprep.mubr.f32.mxu0 0.0
  %829 = vmatmul.mubr.f32.gmra.mrb[0].mxu0 %v476
  %v830 = vpop.f32.mrb[0].mxu0
  %v831 = vadd.f32 0.0, %v830
  %v832 = vpop.f32.mrb[0].mxu0
  %833 = vmatprep.mubr.f32.mxu0 0.0
  %834 = vmatmul.mubr.f32.gmra.mrb[0].mxu0 %v481
  %v835 = vpop.f32.mrb[0].mxu0
  %v836 = vadd.f32 0.0, %v835
  %v837 = vpop.f32.mrb[0].mxu0
  %838 = vmatprep.mubr.f32.mxu0 0.0
  %839 = vmatmul.mubr.f32.gmra.mrb[0].mxu0 %v484
  %v840 = vpop.f32.mrb[0].mxu0
  %v841 = vadd.f32 0.0, %v840
  %v842 = vpop.f32.mrb[0].mxu0
  %843 = vmatprep.mubr.f32.mxu0 0.0
  %844 = vmatmul.mubr.f32.gmra.mrb[0].mxu0 %v489
  %v845 = vpop.f32.mrb[0].mxu0
  %v846 = vadd.f32 0.0, %v845
  %v847 = vpop.f32.mrb[0].mxu0
  %848 = vmatprep.mubr.f32.mxu0 0.0
  %849 = vmatmul.mubr.f32.gmra.mrb[0].mxu0 %v492
  %v850 = vpop.f32.mrb[0].mxu0
  %v851 = vadd.f32 0.0, %v850
  %v852 = vpop.f32.mrb[0].mxu0
  %853 = vmatprep.mubr.f32.mxu0 0.0
  %854 = vmatmul.mubr.f32.gmra.mrb[0].mxu0 %v497
  %v855 = vpop.f32.mrb[0].mxu0
  %v856 = vadd.f32 0.0, %v855
  %v857 = vpop.f32.mrb[0].mxu0
  %858 = vmatprep.mubr.f32.mxu0 0.0
  %859 = vmatmul.mubr.f32.gmra.mrb[0].mxu0 %v500
  %v860 = vpop.f32.mrb[0].mxu0
  %v861 = vadd.f32 0.0, %v860
  %v862 = vpop.f32.mrb[0].mxu0
  %863 = vmatprep.mubr.f32.mxu0 0.0
  %864 = vmatmul.mubr.f32.gmra.mrb[0].mxu0 %v505
  %v865 = vpop.f32.mrb[0].mxu0
  %v866 = vadd.f32 0.0, %v865
  %v867 = vpop.f32.mrb[0].mxu0
  %868 = vmatprep.mubr.f32.mxu0 0.0
  %869 = vmatmul.mubr.f32.gmra.mrb[0].mxu0 %v508
  %v870 = vpop.f32.mrb[0].mxu0
  %v871 = vadd.f32 0.0, %v870
  %v872 = vpop.f32.mrb[0].mxu0
  %873 = vmatprep.mubr.f32.mxu0 0.0
  %874 = vmatmul.mubr.f32.gmra.mrb[0].mxu0 %v513
  %v875 = vpop.f32.mrb[0].mxu0
  %v876 = vadd.f32 0.0, %v875
  %v877 = vpop.f32.mrb[0].mxu0
  %878 = vmatprep.mubr.f32.mxu0 0.0
  %879 = vmatmul.mubr.f32.gmra.mrb[0].mxu0 %v516
  %v880 = vpop.f32.mrb[0].mxu0
  %v881 = vadd.f32 0.0, %v880
  %v882 = vpop.f32.mrb[0].mxu0
  %883 = vmatprep.mubr.f32.mxu0 0.0
  %884 = vmatmul.mubr.f32.gmra.mrb[0].mxu0 %v521
  %v885 = vpop.f32.mrb[0].mxu0
  %v886 = vadd.f32 0.0, %v885
  %v887 = vpop.f32.mrb[0].mxu0
  %888 = vmatprep.mubr.f32.mxu0 0.0
  %889 = vmatmul.mubr.f32.gmra.mrb[0].mxu0 %v524
  %v890 = vpop.f32.mrb[0].mxu0
  %v891 = vadd.f32 0.0, %v890
  %v892 = vpop.f32.mrb[0].mxu0
  %893 = vmatprep.mubr.f32.mxu0 0.0
  %894 = vmatmul.mubr.f32.gmra.mrb[0].mxu0 %v529
  %v895 = vpop.f32.mrb[0].mxu0
  %v896 = vadd.f32 0.0, %v895
  %v897 = vpop.f32.mrb[0].mxu0
  %898 = vmatprep.mubr.f32.mxu0 0.0
  %899 = vmatmul.mubr.f32.gmra.mrb[0].mxu0 %v532
  %v900 = vpop.f32.mrb[0].mxu0
  %v901 = vadd.f32 0.0, %v900
  %v902 = vpop.f32.mrb[0].mxu0
  %903 = vmatprep.mubr.f32.mxu0 0.0
  %904 = vmatmul.mubr.f32.gmra.mrb[0].mxu0 %v537
  %v905 = vpop.f32.mrb[0].mxu0
  %v906 = vadd.f32 0.0, %v905
  %v907 = vpop.f32.mrb[0].mxu0
  %908 = vmatprep.mubr.f32.mxu0 0.0
  %909 = vmatmul.mubr.f32.gmra.mrb[0].mxu0 %v540
  %v910 = vpop.f32.mrb[0].mxu0
  %v911 = vadd.f32 0.0, %v910
  %v912 = vpop.f32.mrb[0].mxu0
  %913 = vmatprep.mubr.f32.mxu0 0.0
  %914 = vmatmul.mubr.f32.gmra.mrb[0].mxu0 %v545
  %v915 = vpop.f32.mrb[0].mxu0
  %v916 = vadd.f32 0.0, %v915
  %v917 = vpop.f32.mrb[0].mxu0
  %918 = vmatprep.mubr.f32.mxu0 0.0
  %919 = vmatmul.mubr.f32.gmra.mrb[0].mxu0 %v548
  %v920 = vpop.f32.mrb[0].mxu0
  %v921 = vadd.f32 0.0, %v920
  %v922 = vpop.f32.mrb[0].mxu0
  %923 = vmatprep.mubr.f32.mxu0 0.0
  %924 = vmatmul.mubr.f32.gmra.mrb[0].mxu0 %v553
  %v925 = vpop.f32.mrb[0].mxu0
  %v926 = vadd.f32 0.0, %v925
  %v927 = vpop.f32.mrb[0].mxu0
  %928 = vmatprep.mubr.f32.mxu0 0.0
  %929 = vmatmul.mubr.f32.gmra.mrb[0].mxu0 %v556
  %v930 = vpop.f32.mrb[0].mxu0
  %v931 = vadd.f32 0.0, %v930
  %v932 = vpop.f32.mrb[0].mxu0
  %933 = vmatprep.mubr.f32.mxu0 0.0
  %934 = vmatmul.mubr.f32.gmra.mrb[0].mxu0 %v561
  %v935 = vpop.f32.mrb[0].mxu0
  %v936 = vadd.f32 0.0, %v935
  %v937 = vpop.f32.mrb[0].mxu0
  %938 = vmatprep.mubr.f32.mxu0 0.0
  %939 = vmatmul.mubr.f32.gmra.mrb[0].mxu0 %v564
  %v940 = vpop.f32.mrb[0].mxu0
  %v941 = vadd.f32 0.0, %v940
  %v942 = vpop.f32.mrb[0].mxu0
  %943 = vmatprep.mubr.f32.mxu0 0.0
  %944 = vmatmul.mubr.f32.gmra.mrb[0].mxu0 %v569
  %v945 = vpop.f32.mrb[0].mxu0
  %v946 = vadd.f32 0.0, %v945
  %v947 = vpop.f32.mrb[0].mxu0
  %948 = vmatprep.mubr.f32.mxu0 0.0
  %949 = vmatmul.mubr.f32.gmra.mrb[0].mxu0 %v572
  %v950 = vpop.f32.mrb[0].mxu0
  %v951 = vadd.f32 0.0, %v950
  %v952 = vpop.f32.mrb[0].mxu0
  %953 = vmatprep.mubr.f32.mxu0 0.0
  %954 = vmatmul.mubr.f32.gmra.mrb[0].mxu0 %v577
  %v955 = vpop.f32.mrb[0].mxu0
  %v956 = vadd.f32 0.0, %v955
  %v957 = vpop.f32.mrb[0].mxu0
  %958 = vmatprep.mubr.f32.mxu0 0.0
  %959 = vmatmul.mubr.f32.gmra.mrb[0].mxu0 %v580
  %v960 = vpop.f32.mrb[0].mxu0
  %v961 = vadd.f32 0.0, %v960
  %v962 = vpop.f32.mrb[0].mxu0
  %963 = vmatprep.mubr.f32.mxu0 0.0
  %964 = vmatmul.mubr.f32.gmra.mrb[0].mxu0 %v585
  %v965 = vpop.f32.mrb[0].mxu0
  %v966 = vadd.f32 0.0, %v965
  %v967 = vpop.f32.mrb[0].mxu0
  %968 = vmatprep.mubr.f32.mxu0 0.0
  %969 = vmatmul.mubr.f32.gmra.mrb[0].mxu0 %v588
  %v970 = vpop.f32.mrb[0].mxu0
  %v971 = vadd.f32 0.0, %v970
  %v972 = vpop.f32.mrb[0].mxu0
  %973 = vmatprep.mubr.f32.mxu0 0.0
  %974 = vmatmul.mubr.f32.gmra.mrb[0].mxu0 %v593
  %v975 = vpop.f32.mrb[0].mxu0
  %v976 = vadd.f32 0.0, %v975
  %v977 = vpop.f32.mrb[0].mxu0
  %978 = vmatprep.mubr.f32.mxu0 0.0
  %979 = vmatmul.mubr.f32.gmra.mrb[0].mxu0 %v596
  %v980 = vpop.f32.mrb[0].mxu0
  %v981 = vadd.f32 0.0, %v980
  %v982 = vpop.f32.mrb[0].mxu0
  %983 = vmatprep.mubr.f32.mxu0 0.0
  %984 = vmatmul.mubr.f32.gmra.mrb[0].mxu0 %v601
  %v985 = vpop.f32.mrb[0].mxu0
  %v986 = vadd.f32 0.0, %v985
  %v987 = vpop.f32.mrb[0].mxu0
  %988 = vmatprep.mubr.f32.mxu0 0.0
  %989 = vmatmul.mubr.f32.gmra.mrb[0].mxu0 %v604
  %v990 = vpop.f32.mrb[0].mxu0
  %v991 = vadd.f32 0.0, %v990
  %v992 = vpop.f32.mrb[0].mxu0
  %993 = vmatprep.mubr.f32.mxu0 0.0
  %994 = vmatmul.mubr.f32.gmra.mrb[0].mxu0 %v609
  %v995 = vpop.f32.mrb[0].mxu0
  %v996 = vadd.f32 0.0, %v995
  %v997 = vpop.f32.mrb[0].mxu0
  %998 = vmatprep.mubr.f32.mxu0 0.0
  %999 = vmatmul.mubr.f32.gmra.mrb[0].mxu0 %v612
  %v1000 = vpop.f32.mrb[0].mxu0
  %v1001 = vadd.f32 0.0, %v1000
  %v1002 = vpop.f32.mrb[0].mxu0
  %1003 = vmatprep.mubr.f32.mxu0 0.0
  %1004 = vmatmul.mubr.f32.gmra.mrb[0].mxu0 %v617
  %v1005 = vpop.f32.mrb[0].mxu0
  %v1006 = vadd.f32 0.0, %v1005
  %v1007 = vpop.f32.mrb[0].mxu0
  %1008 = vmatprep.mubr.f32.mxu0 0.0
  %1009 = vmatmul.mubr.f32.gmra.mrb[0].mxu0 %v620
  %v1010 = vpop.f32.mrb[0].mxu0
  %v1011 = vadd.f32 0.0, %v1010
  %v1012 = vpop.f32.mrb[0].mxu0
  %1013 = vmatprep.mubr.f32.mxu0 0.0
  %1014 = vmatmul.mubr.f32.gmra.mrb[0].mxu0 %v625
  %v1015 = vpop.f32.mrb[0].mxu0
  %v1016 = vadd.f32 0.0, %v1015
  %v1017 = vpop.f32.mrb[0].mxu0
  %1018 = vmatprep.mubr.f32.mxu0 0.0
  %1019 = vmatmul.mubr.f32.gmra.mrb[0].mxu0 %v628
  %v1020 = vpop.f32.mrb[0].mxu0
  %v1021 = vadd.f32 0.0, %v1020
  %v1022 = vpop.f32.mrb[0].mxu0
  %1023 = vmatprep.mubr.f32.mxu0 0.0
  %1024 = vmatmul.mubr.f32.gmra.mrb[0].mxu0 %v633
  %v1025 = vpop.f32.mrb[0].mxu0
  %v1026 = vadd.f32 0.0, %v1025
  %v1027 = vpop.f32.mrb[0].mxu0
  %1028 = vmatprep.mubr.f32.mxu0 0.0
  %1029 = vmatmul.mubr.f32.gmra.mrb[0].mxu0 %v636
  %v1030 = vpop.f32.mrb[0].mxu0
  %v1031 = vadd.f32 0.0, %v1030
  %v1032 = vpop.f32.mrb[0].mxu0
  %1033 = vmatprep.mubr.f32.mxu0 0.0
  %1034 = vmatmul.mubr.f32.gmra.mrb[0].mxu0 %v641
  %v1035 = vpop.f32.mrb[0].mxu0
  %v1036 = vadd.f32 0.0, %v1035
  %v1037 = vpop.f32.mrb[0].mxu0
  %1038 = vmatprep.mubr.f32.mxu0 0.0
  %1039 = vmatmul.mubr.f32.gmra.mrb[0].mxu0 %v644
  %v1040 = vpop.f32.mrb[0].mxu0
  %v1041 = vadd.f32 0.0, %v1040
  %v1042 = vpop.f32.mrb[0].mxu0
  %1043 = vmatprep.mubr.f32.mxu0 0.0
  %1044 = vmatmul.mubr.f32.gmra.mrb[0].mxu0 %v649
  %v1045 = vpop.f32.mrb[0].mxu0
  %v1046 = vadd.f32 0.0, %v1045
  %v1047 = vpop.f32.mrb[0].mxu0
  %1048 = vmatprep.mubr.f32.mxu0 0.0
  %1049 = vmatmul.mubr.f32.gmra.mrb[0].mxu0 %v652
  %v1050 = vpop.f32.mrb[0].mxu0
  %v1051 = vadd.f32 0.0, %v1050
  %v1052 = vpop.f32.mrb[0].mxu0
  %1053 = vmatprep.mubr.f32.mxu0 0.0
  %1054 = vmatmul.mubr.f32.gmra.mrb[0].mxu0 %v657
  %v1055 = vpop.f32.mrb[0].mxu0
  %v1056 = vadd.f32 0.0, %v1055
  %v1057 = vpop.f32.mrb[0].mxu0
  %1058 = vmatprep.mubr.f32.mxu0 0.0
  %1059 = vmatmul.mubr.f32.gmra.mrb[0].mxu0 %v660
  %v1060 = vpop.f32.mrb[0].mxu0
  %v1061 = vadd.f32 0.0, %v1060
  %v1062 = vpop.f32.mrb[0].mxu0
  %1063 = vdwg.mxu0
  %v1064 = vsub.f32 %v409, %v746
  %v1065 = vsub.f32 %v412, %v751
  %v1066 = vsub.f32 %v417, %v756
  %v1067 = vsub.f32 %v420, %v761
  %v1068 = vsub.f32 %v425, %v766
  %v1069 = vsub.f32 %v428, %v771
  %v1070 = vsub.f32 %v433, %v776
  %v1071 = vsub.f32 %v436, %v781
  %v1072 = vsub.f32 %v441, %v786
  %v1073 = vsub.f32 %v444, %v791
  %v1074 = vsub.f32 %v449, %v796
  %v1075 = vsub.f32 %v452, %v801
  %v1076 = vsub.f32 %v457, %v806
  %v1077 = vsub.f32 %v460, %v811
  %v1078 = vsub.f32 %v465, %v816
  %v1079 = vsub.f32 %v468, %v821
  %v1080 = vsub.f32 %v473, %v826
  %v1081 = vsub.f32 %v476, %v831
  %v1082 = vsub.f32 %v481, %v836
  %v1083 = vsub.f32 %v484, %v841
  %v1084 = vsub.f32 %v489, %v846
  %v1085 = vsub.f32 %v492, %v851
  %v1086 = vsub.f32 %v497, %v856
  %v1087 = vsub.f32 %v500, %v861
  %v1088 = vsub.f32 %v505, %v866
  %v1089 = vsub.f32 %v508, %v871
  %v1090 = vsub.f32 %v513, %v876
  %v1091 = vsub.f32 %v516, %v881
  %v1092 = vsub.f32 %v521, %v886
  %v1093 = vsub.f32 %v524, %v891
  %v1094 = vsub.f32 %v529, %v896
  %v1095 = vsub.f32 %v532, %v901
  %v1096 = vsub.f32 %v537, %v906
  %v1097 = vsub.f32 %v540, %v911
  %v1098 = vsub.f32 %v545, %v916
  %v1099 = vsub.f32 %v548, %v921
  %v1100 = vsub.f32 %v553, %v926
  %v1101 = vsub.f32 %v556, %v931
  %v1102 = vsub.f32 %v561, %v936
  %v1103 = vsub.f32 %v564, %v941
  %v1104 = vsub.f32 %v569, %v946
  %v1105 = vsub.f32 %v572, %v951
  %v1106 = vsub.f32 %v577, %v956
  %v1107 = vsub.f32 %v580, %v961
  %v1108 = vsub.f32 %v585, %v966
  %v1109 = vsub.f32 %v588, %v971
  %v1110 = vsub.f32 %v593, %v976
  %v1111 = vsub.f32 %v596, %v981
  %v1112 = vsub.f32 %v601, %v986
  %v1113 = vsub.f32 %v604, %v991
  %v1114 = vsub.f32 %v609, %v996
  %v1115 = vsub.f32 %v612, %v1001
  %v1116 = vsub.f32 %v617, %v1006
  %v1117 = vsub.f32 %v620, %v1011
  %v1118 = vsub.f32 %v625, %v1016
  %v1119 = vsub.f32 %v628, %v1021
  %v1120 = vsub.f32 %v633, %v1026
  %v1121 = vsub.f32 %v636, %v1031
  %v1122 = vsub.f32 %v641, %v1036
  %v1123 = vsub.f32 %v644, %v1041
  %v1124 = vsub.f32 %v649, %v1046
  %v1125 = vsub.f32 %v652, %v1051
  %v1126 = vsub.f32 %v657, %v1056
  %v1127 = vsub.f32 %v660, %v1061
  %v1128 = vmul.f32 %v1064, %v1064
  %v1129 = vmul.f32 %v1065, %v1065
  %v1130 = vmul.f32 %v1066, %v1066
  %v1131 = vmul.f32 %v1067, %v1067
  %v1132 = vmul.f32 %v1068, %v1068
  %v1133 = vmul.f32 %v1069, %v1069
  %v1134 = vmul.f32 %v1070, %v1070
  %v1135 = vmul.f32 %v1071, %v1071
  %v1136 = vmul.f32 %v1072, %v1072
  %v1137 = vmul.f32 %v1073, %v1073
  %v1138 = vmul.f32 %v1074, %v1074
  %v1139 = vmul.f32 %v1075, %v1075
  %v1140 = vmul.f32 %v1076, %v1076
  %v1141 = vmul.f32 %v1077, %v1077
  %v1142 = vmul.f32 %v1078, %v1078
  %v1143 = vmul.f32 %v1079, %v1079
  %v1144 = vmul.f32 %v1080, %v1080
  %v1145 = vmul.f32 %v1081, %v1081
  %v1146 = vmul.f32 %v1082, %v1082
  %v1147 = vmul.f32 %v1083, %v1083
  %v1148 = vmul.f32 %v1084, %v1084
  %v1149 = vmul.f32 %v1085, %v1085
  %v1150 = vmul.f32 %v1086, %v1086
  %v1151 = vmul.f32 %v1087, %v1087
  %v1152 = vmul.f32 %v1088, %v1088
  %v1153 = vmul.f32 %v1089, %v1089
  %v1154 = vmul.f32 %v1090, %v1090
  %v1155 = vmul.f32 %v1091, %v1091
  %v1156 = vmul.f32 %v1092, %v1092
  %v1157 = vmul.f32 %v1093, %v1093
  %v1158 = vmul.f32 %v1094, %v1094
  %v1159 = vmul.f32 %v1095, %v1095
  %v1160 = vmul.f32 %v1096, %v1096
  %v1161 = vmul.f32 %v1097, %v1097
  %v1162 = vmul.f32 %v1098, %v1098
  %v1163 = vmul.f32 %v1099, %v1099
  %v1164 = vmul.f32 %v1100, %v1100
  %v1165 = vmul.f32 %v1101, %v1101
  %v1166 = vmul.f32 %v1102, %v1102
  %v1167 = vmul.f32 %v1103, %v1103
  %v1168 = vmul.f32 %v1104, %v1104
  %v1169 = vmul.f32 %v1105, %v1105
  %v1170 = vmul.f32 %v1106, %v1106
  %v1171 = vmul.f32 %v1107, %v1107
  %v1172 = vmul.f32 %v1108, %v1108
  %v1173 = vmul.f32 %v1109, %v1109
  %v1174 = vmul.f32 %v1110, %v1110
  %v1175 = vmul.f32 %v1111, %v1111
  %v1176 = vmul.f32 %v1112, %v1112
  %v1177 = vmul.f32 %v1113, %v1113
  %v1178 = vmul.f32 %v1114, %v1114
  %v1179 = vmul.f32 %v1115, %v1115
  %v1180 = vmul.f32 %v1116, %v1116
  %v1181 = vmul.f32 %v1117, %v1117
  %v1182 = vmul.f32 %v1118, %v1118
  %v1183 = vmul.f32 %v1119, %v1119
  %v1184 = vmul.f32 %v1120, %v1120
  %v1185 = vmul.f32 %v1121, %v1121
  %v1186 = vmul.f32 %v1122, %v1122
  %v1187 = vmul.f32 %v1123, %v1123
  %v1188 = vmul.f32 %v1124, %v1124
  %v1189 = vmul.f32 %v1125, %v1125
  %v1190 = vmul.f32 %v1126, %v1126
  %v1191 = vmul.f32 %v1127, %v1127
  %1192 = vmatprep.subr.mxu0 0.0
  %1193 = vmatpush1.msra.mxu0 %v663
  %1194 = vmatprep.subr.mxu0 0.0
  %1195 = vmatpush1.msra.mxu0 %v664
  %1196 = vmatprep.subr.mxu0 0.0
  %1197 = vmatpush1.msra.mxu0 %v665
  %1198 = vmatprep.subr.mxu0 0.0
  %1199 = vmatpush1.msra.mxu0 %v666
  %1200 = vmatprep.subr.mxu0 0.0
  %1201 = vmatpush1.msra.mxu0 %v667
  %1202 = vmatprep.subr.mxu0 0.0
  %1203 = vmatpush1.msra.mxu0 %v668
  %1204 = vmatprep.subr.mxu0 0.0
  %1205 = vmatpush1.msra.mxu0 %v669
  %1206 = vmatprep.subr.mxu0 0.0
  %1207 = vmatpush1.msra.mxu0 %v670
  %1208 = vmatprep.subr.mxu0 0.0
  %1209 = vmatpush1.msra.mxu0 %v671
  %1210 = vmatprep.subr.mxu0 0.0
  %1211 = vmatpush1.msra.mxu0 %v672
  %1212 = vmatprep.subr.mxu0 0.0
  %1213 = vmatpush1.msra.mxu0 %v673
  %1214 = vmatprep.subr.mxu0 0.0
  %1215 = vmatpush1.msra.mxu0 %v674
  %1216 = vmatprep.subr.mxu0 0.0
  %1217 = vmatpush1.msra.mxu0 %v675
  %1218 = vmatprep.subr.mxu0 0.0
  %1219 = vmatpush1.msra.mxu0 %v676
  %1220 = vmatprep.subr.mxu0 0.0
  %1221 = vmatpush1.msra.mxu0 %v677
  %1222 = vmatprep.subr.mxu0 0.0
  %1223 = vmatpush1.msra.mxu0 %v678
  %1224 = vmatprep.subr.mxu0 0.0
  %1225 = vmatpush1.msra.mxu0 0.0
  %1226 = vmatprep.subr.mxu0 0.0
  %1227 = vmatpush1.msra.mxu0 0.0
  %1228 = vmatprep.subr.mxu0 0.0
  %1229 = vmatpush1.msra.mxu0 0.0
  %1230 = vmatprep.subr.mxu0 0.0
  %1231 = vmatpush1.msra.mxu0 0.0
  %1232 = vmatprep.subr.mxu0 0.0
  %1233 = vmatpush1.msra.mxu0 0.0
  %1234 = vmatprep.subr.mxu0 0.0
  %1235 = vmatpush1.msra.mxu0 0.0
  %1236 = vmatprep.subr.mxu0 0.0
  %1237 = vmatpush1.msra.mxu0 0.0
  %1238 = vmatprep.subr.mxu0 0.0
  %1239 = vmatpush1.msra.mxu0 0.0
  %1240 = vmatprep.subr.mxu0 0.0
  %1241 = vmatpush1.msra.mxu0 0.0
  %1242 = vmatprep.subr.mxu0 0.0
  %1243 = vmatpush1.msra.mxu0 0.0
  %1244 = vmatprep.subr.mxu0 0.0
  %1245 = vmatpush1.msra.mxu0 0.0
  %1246 = vmatprep.subr.mxu0 0.0
  %1247 = vmatpush1.msra.mxu0 0.0
  %1248 = vmatprep.subr.mxu0 0.0
  %1249 = vmatpush1.msra.mxu0 0.0
  %1250 = vmatprep.subr.mxu0 0.0
  %1251 = vmatpush1.msra.mxu0 0.0
  %1252 = vmatprep.subr.mxu0 0.0
  %1253 = vmatpush1.msra.mxu0 0.0
  %1254 = vmatprep.subr.mxu0 0.0
  %1255 = vmatpush1.msra.mxu0 0.0
  %1256 = vmatprep.mubr.f32.mxu0 0.0
  %1257 = vmatmul.mubr.f32.gmra.mrb[0].mxu0 %v1128
  %v1258 = vpop.f32.mrb[0].mxu0
  %v1259 = vadd.f32 1e-05, %v1258
  %v1260 = vpop.f32.mrb[0].mxu0
  %1261 = vmatprep.mubr.f32.mxu0 0.0
  %1262 = vmatmul.mubr.f32.gmra.mrb[0].mxu0 %v1129
  %v1263 = vpop.f32.mrb[0].mxu0
  %v1264 = vadd.f32 1e-05, %v1263
  %v1265 = vpop.f32.mrb[0].mxu0
  %1266 = vmatprep.mubr.f32.mxu0 0.0
  %1267 = vmatmul.mubr.f32.gmra.mrb[0].mxu0 %v1130
  %v1268 = vpop.f32.mrb[0].mxu0
  %v1269 = vadd.f32 1e-05, %v1268
  %v1270 = vpop.f32.mrb[0].mxu0
  %1271 = vmatprep.mubr.f32.mxu0 0.0
  %1272 = vmatmul.mubr.f32.gmra.mrb[0].mxu0 %v1131
  %v1273 = vpop.f32.mrb[0].mxu0
  %v1274 = vadd.f32 1e-05, %v1273
  %v1275 = vpop.f32.mrb[0].mxu0
  %1276 = vmatprep.mubr.f32.mxu0 0.0
  %1277 = vmatmul.mubr.f32.gmra.mrb[0].mxu0 %v1132
  %v1278 = vpop.f32.mrb[0].mxu0
  %v1279 = vadd.f32 1e-05, %v1278
  %v1280 = vpop.f32.mrb[0].mxu0
  %1281 = vmatprep.mubr.f32.mxu0 0.0
  %1282 = vmatmul.mubr.f32.gmra.mrb[0].mxu0 %v1133
  %v1283 = vpop.f32.mrb[0].mxu0
  %v1284 = vadd.f32 1e-05, %v1283
  %v1285 = vpop.f32.mrb[0].mxu0
  %1286 = vmatprep.mubr.f32.mxu0 0.0
  %1287 = vmatmul.mubr.f32.gmra.mrb[0].mxu0 %v1134
  %v1288 = vpop.f32.mrb[0].mxu0
  %v1289 = vadd.f32 1e-05, %v1288
  %v1290 = vpop.f32.mrb[0].mxu0
  %1291 = vmatprep.mubr.f32.mxu0 0.0
  %1292 = vmatmul.mubr.f32.gmra.mrb[0].mxu0 %v1135
  %v1293 = vpop.f32.mrb[0].mxu0
  %v1294 = vadd.f32 1e-05, %v1293
  %v1295 = vpop.f32.mrb[0].mxu0
  %1296 = vmatprep.mubr.f32.mxu0 0.0
  %1297 = vmatmul.mubr.f32.gmra.mrb[0].mxu0 %v1136
  %v1298 = vpop.f32.mrb[0].mxu0
  %v1299 = vadd.f32 1e-05, %v1298
  %v1300 = vpop.f32.mrb[0].mxu0
  %1301 = vmatprep.mubr.f32.mxu0 0.0
  %1302 = vmatmul.mubr.f32.gmra.mrb[0].mxu0 %v1137
  %v1303 = vpop.f32.mrb[0].mxu0
  %v1304 = vadd.f32 1e-05, %v1303
  %v1305 = vpop.f32.mrb[0].mxu0
  %1306 = vmatprep.mubr.f32.mxu0 0.0
  %1307 = vmatmul.mubr.f32.gmra.mrb[0].mxu0 %v1138
  %v1308 = vpop.f32.mrb[0].mxu0
  %v1309 = vadd.f32 1e-05, %v1308
  %v1310 = vpop.f32.mrb[0].mxu0
  %1311 = vmatprep.mubr.f32.mxu0 0.0
  %1312 = vmatmul.mubr.f32.gmra.mrb[0].mxu0 %v1139
  %v1313 = vpop.f32.mrb[0].mxu0
  %v1314 = vadd.f32 1e-05, %v1313
  %v1315 = vpop.f32.mrb[0].mxu0
  %1316 = vmatprep.mubr.f32.mxu0 0.0
  %1317 = vmatmul.mubr.f32.gmra.mrb[0].mxu0 %v1140
  %v1318 = vpop.f32.mrb[0].mxu0
  %v1319 = vadd.f32 1e-05, %v1318
  %v1320 = vpop.f32.mrb[0].mxu0
  %1321 = vmatprep.mubr.f32.mxu0 0.0
  %1322 = vmatmul.mubr.f32.gmra.mrb[0].mxu0 %v1141
  %v1323 = vpop.f32.mrb[0].mxu0
  %v1324 = vadd.f32 1e-05, %v1323
  %v1325 = vpop.f32.mrb[0].mxu0
  %1326 = vmatprep.mubr.f32.mxu0 0.0
  %1327 = vmatmul.mubr.f32.gmra.mrb[0].mxu0 %v1142
  %v1328 = vpop.f32.mrb[0].mxu0
  %v1329 = vadd.f32 1e-05, %v1328
  %v1330 = vpop.f32.mrb[0].mxu0
  %1331 = vmatprep.mubr.f32.mxu0 0.0
  %1332 = vmatmul.mubr.f32.gmra.mrb[0].mxu0 %v1143
  %v1333 = vpop.f32.mrb[0].mxu0
  %v1334 = vadd.f32 1e-05, %v1333
  %v1335 = vpop.f32.mrb[0].mxu0
  %1336 = vmatprep.mubr.f32.mxu0 0.0
  %1337 = vmatmul.mubr.f32.gmra.mrb[0].mxu0 %v1144
  %v1338 = vpop.f32.mrb[0].mxu0
  %v1339 = vadd.f32 1e-05, %v1338
  %v1340 = vpop.f32.mrb[0].mxu0
  %1341 = vmatprep.mubr.f32.mxu0 0.0
  %1342 = vmatmul.mubr.f32.gmra.mrb[0].mxu0 %v1145
  %v1343 = vpop.f32.mrb[0].mxu0
  %v1344 = vadd.f32 1e-05, %v1343
  %v1345 = vpop.f32.mrb[0].mxu0
  %1346 = vmatprep.mubr.f32.mxu0 0.0
  %1347 = vmatmul.mubr.f32.gmra.mrb[0].mxu0 %v1146
  %v1348 = vpop.f32.mrb[0].mxu0
  %v1349 = vadd.f32 1e-05, %v1348
  %v1350 = vpop.f32.mrb[0].mxu0
  %1351 = vmatprep.mubr.f32.mxu0 0.0
  %1352 = vmatmul.mubr.f32.gmra.mrb[0].mxu0 %v1147
  %v1353 = vpop.f32.mrb[0].mxu0
  %v1354 = vadd.f32 1e-05, %v1353
  %v1355 = vpop.f32.mrb[0].mxu0
  %1356 = vmatprep.mubr.f32.mxu0 0.0
  %1357 = vmatmul.mubr.f32.gmra.mrb[0].mxu0 %v1148
  %v1358 = vpop.f32.mrb[0].mxu0
  %v1359 = vadd.f32 1e-05, %v1358
  %v1360 = vpop.f32.mrb[0].mxu0
  %1361 = vmatprep.mubr.f32.mxu0 0.0
  %1362 = vmatmul.mubr.f32.gmra.mrb[0].mxu0 %v1149
  %v1363 = vpop.f32.mrb[0].mxu0
  %v1364 = vadd.f32 1e-05, %v1363
  %v1365 = vpop.f32.mrb[0].mxu0
  %1366 = vmatprep.mubr.f32.mxu0 0.0
  %1367 = vmatmul.mubr.f32.gmra.mrb[0].mxu0 %v1150
  %v1368 = vpop.f32.mrb[0].mxu0
  %v1369 = vadd.f32 1e-05, %v1368
  %v1370 = vpop.f32.mrb[0].mxu0
  %1371 = vmatprep.mubr.f32.mxu0 0.0
  %1372 = vmatmul.mubr.f32.gmra.mrb[0].mxu0 %v1151
  %v1373 = vpop.f32.mrb[0].mxu0
  %v1374 = vadd.f32 1e-05, %v1373
  %v1375 = vpop.f32.mrb[0].mxu0
  %1376 = vmatprep.mubr.f32.mxu0 0.0
  %1377 = vmatmul.mubr.f32.gmra.mrb[0].mxu0 %v1152
  %v1378 = vpop.f32.mrb[0].mxu0
  %v1379 = vadd.f32 1e-05, %v1378
  %v1380 = vpop.f32.mrb[0].mxu0
  %1381 = vmatprep.mubr.f32.mxu0 0.0
  %1382 = vmatmul.mubr.f32.gmra.mrb[0].mxu0 %v1153
  %v1383 = vpop.f32.mrb[0].mxu0
  %v1384 = vadd.f32 1e-05, %v1383
  %v1385 = vpop.f32.mrb[0].mxu0
  %1386 = vmatprep.mubr.f32.mxu0 0.0
  %1387 = vmatmul.mubr.f32.gmra.mrb[0].mxu0 %v1154
  %v1388 = vpop.f32.mrb[0].mxu0
  %v1389 = vadd.f32 1e-05, %v1388
  %v1390 = vpop.f32.mrb[0].mxu0
  %1391 = vmatprep.mubr.f32.mxu0 0.0
  %1392 = vmatmul.mubr.f32.gmra.mrb[0].mxu0 %v1155
  %v1393 = vpop.f32.mrb[0].mxu0
  %v1394 = vadd.f32 1e-05, %v1393
  %v1395 = vpop.f32.mrb[0].mxu0
  %1396 = vmatprep.mubr.f32.mxu0 0.0
  %1397 = vmatmul.mubr.f32.gmra.mrb[0].mxu0 %v1156
  %v1398 = vpop.f32.mrb[0].mxu0
  %v1399 = vadd.f32 1e-05, %v1398
  %v1400 = vpop.f32.mrb[0].mxu0
  %1401 = vmatprep.mubr.f32.mxu0 0.0
  %1402 = vmatmul.mubr.f32.gmra.mrb[0].mxu0 %v1157
  %v1403 = vpop.f32.mrb[0].mxu0
  %v1404 = vadd.f32 1e-05, %v1403
  %v1405 = vpop.f32.mrb[0].mxu0
  %1406 = vmatprep.mubr.f32.mxu0 0.0
  %1407 = vmatmul.mubr.f32.gmra.mrb[0].mxu0 %v1158
  %v1408 = vpop.f32.mrb[0].mxu0
  %v1409 = vadd.f32 1e-05, %v1408
  %v1410 = vpop.f32.mrb[0].mxu0
  %1411 = vmatprep.mubr.f32.mxu0 0.0
  %1412 = vmatmul.mubr.f32.gmra.mrb[0].mxu0 %v1159
  %v1413 = vpop.f32.mrb[0].mxu0
  %v1414 = vadd.f32 1e-05, %v1413
  %v1415 = vpop.f32.mrb[0].mxu0
  %1416 = vmatprep.mubr.f32.mxu0 0.0
  %1417 = vmatmul.mubr.f32.gmra.mrb[0].mxu0 %v1160
  %v1418 = vpop.f32.mrb[0].mxu0
  %v1419 = vadd.f32 1e-05, %v1418
  %v1420 = vpop.f32.mrb[0].mxu0
  %1421 = vmatprep.mubr.f32.mxu0 0.0
  %1422 = vmatmul.mubr.f32.gmra.mrb[0].mxu0 %v1161
  %v1423 = vpop.f32.mrb[0].mxu0
  %v1424 = vadd.f32 1e-05, %v1423
  %v1425 = vpop.f32.mrb[0].mxu0
  %1426 = vmatprep.mubr.f32.mxu0 0.0
  %1427 = vmatmul.mubr.f32.gmra.mrb[0].mxu0 %v1162
  %v1428 = vpop.f32.mrb[0].mxu0
  %v1429 = vadd.f32 1e-05, %v1428
  %v1430 = vpop.f32.mrb[0].mxu0
  %1431 = vmatprep.mubr.f32.mxu0 0.0
  %1432 = vmatmul.mubr.f32.gmra.mrb[0].mxu0 %v1163
  %v1433 = vpop.f32.mrb[0].mxu0
  %v1434 = vadd.f32 1e-05, %v1433
  %v1435 = vpop.f32.mrb[0].mxu0
  %1436 = vmatprep.mubr.f32.mxu0 0.0
  %1437 = vmatmul.mubr.f32.gmra.mrb[0].mxu0 %v1164
  %v1438 = vpop.f32.mrb[0].mxu0
  %v1439 = vadd.f32 1e-05, %v1438
  %v1440 = vpop.f32.mrb[0].mxu0
  %1441 = vmatprep.mubr.f32.mxu0 0.0
  %1442 = vmatmul.mubr.f32.gmra.mrb[0].mxu0 %v1165
  %v1443 = vpop.f32.mrb[0].mxu0
  %v1444 = vadd.f32 1e-05, %v1443
  %v1445 = vpop.f32.mrb[0].mxu0
  %1446 = vmatprep.mubr.f32.mxu0 0.0
  %1447 = vmatmul.mubr.f32.gmra.mrb[0].mxu0 %v1166
  %v1448 = vpop.f32.mrb[0].mxu0
  %v1449 = vadd.f32 1e-05, %v1448
  %v1450 = vpop.f32.mrb[0].mxu0
  %1451 = vmatprep.mubr.f32.mxu0 0.0
  %1452 = vmatmul.mubr.f32.gmra.mrb[0].mxu0 %v1167
  %v1453 = vpop.f32.mrb[0].mxu0
  %v1454 = vadd.f32 1e-05, %v1453
  %v1455 = vpop.f32.mrb[0].mxu0
  %1456 = vmatprep.mubr.f32.mxu0 0.0
  %1457 = vmatmul.mubr.f32.gmra.mrb[0].mxu0 %v1168
  %v1458 = vpop.f32.mrb[0].mxu0
  %v1459 = vadd.f32 1e-05, %v1458
  %v1460 = vpop.f32.mrb[0].mxu0
  %1461 = vmatprep.mubr.f32.mxu0 0.0
  %1462 = vmatmul.mubr.f32.gmra.mrb[0].mxu0 %v1169
  %v1463 = vpop.f32.mrb[0].mxu0
  %v1464 = vadd.f32 1e-05, %v1463
  %v1465 = vpop.f32.mrb[0].mxu0
  %1466 = vmatprep.mubr.f32.mxu0 0.0
  %1467 = vmatmul.mubr.f32.gmra.mrb[0].mxu0 %v1170
  %v1468 = vpop.f32.mrb[0].mxu0
  %v1469 = vadd.f32 1e-05, %v1468
  %v1470 = vpop.f32.mrb[0].mxu0
  %1471 = vmatprep.mubr.f32.mxu0 0.0
  %1472 = vmatmul.mubr.f32.gmra.mrb[0].mxu0 %v1171
  %v1473 = vpop.f32.mrb[0].mxu0
  %v1474 = vadd.f32 1e-05, %v1473
  %v1475 = vpop.f32.mrb[0].mxu0
  %1476 = vmatprep.mubr.f32.mxu0 0.0
  %1477 = vmatmul.mubr.f32.gmra.mrb[0].mxu0 %v1172
  %v1478 = vpop.f32.mrb[0].mxu0
  %v1479 = vadd.f32 1e-05, %v1478
  %v1480 = vpop.f32.mrb[0].mxu0
  %1481 = vmatprep.mubr.f32.mxu0 0.0
  %1482 = vmatmul.mubr.f32.gmra.mrb[0].mxu0 %v1173
  %v1483 = vpop.f32.mrb[0].mxu0
  %v1484 = vadd.f32 1e-05, %v1483
  %v1485 = vpop.f32.mrb[0].mxu0
  %1486 = vmatprep.mubr.f32.mxu0 0.0
  %1487 = vmatmul.mubr.f32.gmra.mrb[0].mxu0 %v1174
  %v1488 = vpop.f32.mrb[0].mxu0
  %v1489 = vadd.f32 1e-05, %v1488
  %v1490 = vpop.f32.mrb[0].mxu0
  %1491 = vmatprep.mubr.f32.mxu0 0.0
  %1492 = vmatmul.mubr.f32.gmra.mrb[0].mxu0 %v1175
  %v1493 = vpop.f32.mrb[0].mxu0
  %v1494 = vadd.f32 1e-05, %v1493
  %v1495 = vpop.f32.mrb[0].mxu0
  %1496 = vmatprep.mubr.f32.mxu0 0.0
  %1497 = vmatmul.mubr.f32.gmra.mrb[0].mxu0 %v1176
  %v1498 = vpop.f32.mrb[0].mxu0
  %v1499 = vadd.f32 1e-05, %v1498
  %v1500 = vpop.f32.mrb[0].mxu0
  %1501 = vmatprep.mubr.f32.mxu0 0.0
  %1502 = vmatmul.mubr.f32.gmra.mrb[0].mxu0 %v1177
  %v1503 = vpop.f32.mrb[0].mxu0
  %v1504 = vadd.f32 1e-05, %v1503
  %v1505 = vpop.f32.mrb[0].mxu0
  %1506 = vmatprep.mubr.f32.mxu0 0.0
  %1507 = vmatmul.mubr.f32.gmra.mrb[0].mxu0 %v1178
  %v1508 = vpop.f32.mrb[0].mxu0
  %v1509 = vadd.f32 1e-05, %v1508
  %v1510 = vpop.f32.mrb[0].mxu0
  %1511 = vmatprep.mubr.f32.mxu0 0.0
  %1512 = vmatmul.mubr.f32.gmra.mrb[0].mxu0 %v1179
  %v1513 = vpop.f32.mrb[0].mxu0
  %v1514 = vadd.f32 1e-05, %v1513
  %v1515 = vpop.f32.mrb[0].mxu0
  %1516 = vmatprep.mubr.f32.mxu0 0.0
  %1517 = vmatmul.mubr.f32.gmra.mrb[0].mxu0 %v1180
  %v1518 = vpop.f32.mrb[0].mxu0
  %v1519 = vadd.f32 1e-05, %v1518
  %v1520 = vpop.f32.mrb[0].mxu0
  %1521 = vmatprep.mubr.f32.mxu0 0.0
  %1522 = vmatmul.mubr.f32.gmra.mrb[0].mxu0 %v1181
  %v1523 = vpop.f32.mrb[0].mxu0
  %v1524 = vadd.f32 1e-05, %v1523
  %v1525 = vpop.f32.mrb[0].mxu0
  %1526 = vmatprep.mubr.f32.mxu0 0.0
  %1527 = vmatmul.mubr.f32.gmra.mrb[0].mxu0 %v1182
  %v1528 = vpop.f32.mrb[0].mxu0
  %v1529 = vadd.f32 1e-05, %v1528
  %v1530 = vpop.f32.mrb[0].mxu0
  %1531 = vmatprep.mubr.f32.mxu0 0.0
  %1532 = vmatmul.mubr.f32.gmra.mrb[0].mxu0 %v1183
  %v1533 = vpop.f32.mrb[0].mxu0
  %v1534 = vadd.f32 1e-05, %v1533
  %v1535 = vpop.f32.mrb[0].mxu0
  %1536 = vmatprep.mubr.f32.mxu0 0.0
  %1537 = vmatmul.mubr.f32.gmra.mrb[0].mxu0 %v1184
  %v1538 = vpop.f32.mrb[0].mxu0
  %v1539 = vadd.f32 1e-05, %v1538
  %v1540 = vpop.f32.mrb[0].mxu0
  %1541 = vmatprep.mubr.f32.mxu0 0.0
  %1542 = vmatmul.mubr.f32.gmra.mrb[0].mxu0 %v1185
  %v1543 = vpop.f32.mrb[0].mxu0
  %v1544 = vadd.f32 1e-05, %v1543
  %v1545 = vpop.f32.mrb[0].mxu0
  %1546 = vmatprep.mubr.f32.mxu0 0.0
  %1547 = vmatmul.mubr.f32.gmra.mrb[0].mxu0 %v1186
  %v1548 = vpop.f32.mrb[0].mxu0
  %v1549 = vadd.f32 1e-05, %v1548
  %v1550 = vpop.f32.mrb[0].mxu0
  %1551 = vmatprep.mubr.f32.mxu0 0.0
  %1552 = vmatmul.mubr.f32.gmra.mrb[0].mxu0 %v1187
  %v1553 = vpop.f32.mrb[0].mxu0
  %v1554 = vadd.f32 1e-05, %v1553
  %v1555 = vpop.f32.mrb[0].mxu0
  %1556 = vmatprep.mubr.f32.mxu0 0.0
  %1557 = vmatmul.mubr.f32.gmra.mrb[0].mxu0 %v1188
  %v1558 = vpop.f32.mrb[0].mxu0
  %v1559 = vadd.f32 1e-05, %v1558
  %v1560 = vpop.f32.mrb[0].mxu0
  %1561 = vmatprep.mubr.f32.mxu0 0.0
  %1562 = vmatmul.mubr.f32.gmra.mrb[0].mxu0 %v1189
  %v1563 = vpop.f32.mrb[0].mxu0
  %v1564 = vadd.f32 1e-05, %v1563
  %v1565 = vpop.f32.mrb[0].mxu0
  %1566 = vmatprep.mubr.f32.mxu0 0.0
  %1567 = vmatmul.mubr.f32.gmra.mrb[0].mxu0 %v1190
  %v1568 = vpop.f32.mrb[0].mxu0
  %v1569 = vadd.f32 1e-05, %v1568
  %v1570 = vpop.f32.mrb[0].mxu0
  %1571 = vmatprep.mubr.f32.mxu0 0.0
  %1572 = vmatmul.mubr.f32.gmra.mrb[0].mxu0 %v1191
  %v1573 = vpop.f32.mrb[0].mxu0
  %v1574 = vadd.f32 1e-05, %v1573
  %v1575 = vpop.f32.mrb[0].mxu0
  %1576 = vdwg.mxu0
  %v1577 = vrsqrt.pop %v1259
  %v1578 = vrsqrt.pop %v1264
  %v1579 = vrsqrt.pop %v1269
  %v1580 = vrsqrt.pop %v1274
  %v1581 = vrsqrt.pop %v1279
  %v1582 = vrsqrt.pop %v1284
  %v1583 = vrsqrt.pop %v1289
  %v1584 = vrsqrt.pop %v1294
  %v1585 = vrsqrt.pop %v1299
  %v1586 = vrsqrt.pop %v1304
  %v1587 = vrsqrt.pop %v1309
  %v1588 = vrsqrt.pop %v1314
  %v1589 = vrsqrt.pop %v1319
  %v1590 = vrsqrt.pop %v1324
  %v1591 = vrsqrt.pop %v1329
  %v1592 = vrsqrt.pop %v1334
  %v1593 = vrsqrt.pop %v1339
  %v1594 = vrsqrt.pop %v1344
  %v1595 = vrsqrt.pop %v1349
  %v1596 = vrsqrt.pop %v1354
  %v1597 = vrsqrt.pop %v1359
  %v1598 = vrsqrt.pop %v1364
  %v1599 = vrsqrt.pop %v1369
  %v1600 = vrsqrt.pop %v1374
  %v1601 = vrsqrt.pop %v1379
  %v1602 = vrsqrt.pop %v1384
  %v1603 = vrsqrt.pop %v1389
  %v1604 = vrsqrt.pop %v1394
  %v1605 = vrsqrt.pop %v1399
  %v1606 = vrsqrt.pop %v1404
  %v1607 = vrsqrt.pop %v1409
  %v1608 = vrsqrt.pop %v1414
  %v1609 = vrsqrt.pop %v1419
  %v1610 = vrsqrt.pop %v1424
  %v1611 = vrsqrt.pop %v1429
  %v1612 = vrsqrt.pop %v1434
  %v1613 = vrsqrt.pop %v1439
  %v1614 = vrsqrt.pop %v1444
  %v1615 = vrsqrt.pop %v1449
  %v1616 = vrsqrt.pop %v1454
  %v1617 = vrsqrt.pop %v1459
  %v1618 = vrsqrt.pop %v1464
  %v1619 = vrsqrt.pop %v1469
  %v1620 = vrsqrt.pop %v1474
  %v1621 = vrsqrt.pop %v1479
  %v1622 = vrsqrt.pop %v1484
  %v1623 = vrsqrt.pop %v1489
  %v1624 = vrsqrt.pop %v1494
  %v1625 = vrsqrt.pop %v1499
  %v1626 = vrsqrt.pop %v1504
  %v1627 = vrsqrt.pop %v1509
  %v1628 = vrsqrt.pop %v1514
  %v1629 = vrsqrt.pop %v1519
  %v1630 = vrsqrt.pop %v1524
  %v1631 = vrsqrt.pop %v1529
  %v1632 = vrsqrt.pop %v1534
  %v1633 = vrsqrt.pop %v1539
  %v1634 = vrsqrt.pop %v1544
  %v1635 = vrsqrt.pop %v1549
  %v1636 = vrsqrt.pop %v1554
  %v1637 = vrsqrt.pop %v1559
  %v1638 = vrsqrt.pop %v1564
  %v1639 = vrsqrt.pop %v1569
  %v1640 = vrsqrt.pop %v1574
  %v1641 = vmul.f32 %v1064, %v1577
  %v1642 = vmul.f32 %v1065, %v1578
  %v1643 = vmul.f32 %v1066, %v1579
  %v1644 = vmul.f32 %v1067, %v1580
  %v1645 = vmul.f32 %v1068, %v1581
  %v1646 = vmul.f32 %v1069, %v1582
  %v1647 = vmul.f32 %v1070, %v1583
  %v1648 = vmul.f32 %v1071, %v1584
  %v1649 = vmul.f32 %v1072, %v1585
  %v1650 = vmul.f32 %v1073, %v1586
  %v1651 = vmul.f32 %v1074, %v1587
  %v1652 = vmul.f32 %v1075, %v1588
  %v1653 = vmul.f32 %v1076, %v1589
  %v1654 = vmul.f32 %v1077, %v1590
  %v1655 = vmul.f32 %v1078, %v1591
  %v1656 = vmul.f32 %v1079, %v1592
  %v1657 = vmul.f32 %v1080, %v1593
  %v1658 = vmul.f32 %v1081, %v1594
  %v1659 = vmul.f32 %v1082, %v1595
  %v1660 = vmul.f32 %v1083, %v1596
  %v1661 = vmul.f32 %v1084, %v1597
  %v1662 = vmul.f32 %v1085, %v1598
  %v1663 = vmul.f32 %v1086, %v1599
  %v1664 = vmul.f32 %v1087, %v1600
  %v1665 = vmul.f32 %v1088, %v1601
  %v1666 = vmul.f32 %v1089, %v1602
  %v1667 = vmul.f32 %v1090, %v1603
  %v1668 = vmul.f32 %v1091, %v1604
  %v1669 = vmul.f32 %v1092, %v1605
  %v1670 = vmul.f32 %v1093, %v1606
  %v1671 = vmul.f32 %v1094, %v1607
  %v1672 = vmul.f32 %v1095, %v1608
  %v1673 = vmul.f32 %v1096, %v1609
  %v1674 = vmul.f32 %v1097, %v1610
  %v1675 = vmul.f32 %v1098, %v1611
  %v1676 = vmul.f32 %v1099, %v1612
  %v1677 = vmul.f32 %v1100, %v1613
  %v1678 = vmul.f32 %v1101, %v1614
  %v1679 = vmul.f32 %v1102, %v1615
  %v1680 = vmul.f32 %v1103, %v1616
  %v1681 = vmul.f32 %v1104, %v1617
  %v1682 = vmul.f32 %v1105, %v1618
  %v1683 = vmul.f32 %v1106, %v1619
  %v1684 = vmul.f32 %v1107, %v1620
  %v1685 = vmul.f32 %v1108, %v1621
  %v1686 = vmul.f32 %v1109, %v1622
  %v1687 = vmul.f32 %v1110, %v1623
  %v1688 = vmul.f32 %v1111, %v1624
  %v1689 = vmul.f32 %v1112, %v1625
  %v1690 = vmul.f32 %v1113, %v1626
  %v1691 = vmul.f32 %v1114, %v1627
  %v1692 = vmul.f32 %v1115, %v1628
  %v1693 = vmul.f32 %v1116, %v1629
  %v1694 = vmul.f32 %v1117, %v1630
  %v1695 = vmul.f32 %v1118, %v1631
  %v1696 = vmul.f32 %v1119, %v1632
  %v1697 = vmul.f32 %v1120, %v1633
  %v1698 = vmul.f32 %v1121, %v1634
  %v1699 = vmul.f32 %v1122, %v1635
  %v1700 = vmul.f32 %v1123, %v1636
  %v1701 = vmul.f32 %v1124, %v1637
  %v1702 = vmul.f32 %v1125, %v1638
  %v1703 = vmul.f32 %v1126, %v1639
  %v1704 = vmul.f32 %v1127, %v1640
  %v1705 = vld [vmem:[%s3] sm:$0x1]
  %v1707 = vlaneseq
  %v1708 = vshrl.u32 %v1707, 7
  %v1709 = vsub.s32 0, %v1708
  %v1710 = vrot.slane %v1705, %v1709
  %v1712 = vmul.f32 %v1641, %v1710
  %v1713 = vmul.f32 %v1642, %v1710
  %v1714 = vmul.f32 %v1643, %v1710
  %v1715 = vmul.f32 %v1644, %v1710
  %v1716 = vmul.f32 %v1645, %v1710
  %v1717 = vmul.f32 %v1646, %v1710
  %v1718 = vmul.f32 %v1647, %v1710
  %v1719 = vmul.f32 %v1648, %v1710
  %v1720 = vmul.f32 %v1649, %v1710
  %v1721 = vmul.f32 %v1650, %v1710
  %v1722 = vmul.f32 %v1651, %v1710
  %v1723 = vmul.f32 %v1652, %v1710
  %v1724 = vmul.f32 %v1653, %v1710
  %v1725 = vmul.f32 %v1654, %v1710
  %v1726 = vmul.f32 %v1655, %v1710
  %v1727 = vmul.f32 %v1656, %v1710
  %v1728 = vmul.f32 %v1657, %v1710
  %v1729 = vmul.f32 %v1658, %v1710
  %v1730 = vmul.f32 %v1659, %v1710
  %v1731 = vmul.f32 %v1660, %v1710
  %v1732 = vmul.f32 %v1661, %v1710
  %v1733 = vmul.f32 %v1662, %v1710
  %v1734 = vmul.f32 %v1663, %v1710
  %v1735 = vmul.f32 %v1664, %v1710
  %v1736 = vmul.f32 %v1665, %v1710
  %v1737 = vmul.f32 %v1666, %v1710
  %v1738 = vmul.f32 %v1667, %v1710
  %v1739 = vmul.f32 %v1668, %v1710
  %v1740 = vmul.f32 %v1669, %v1710
  %v1741 = vmul.f32 %v1670, %v1710
  %v1742 = vmul.f32 %v1671, %v1710
  %v1743 = vmul.f32 %v1672, %v1710
  %v1744 = vmul.f32 %v1673, %v1710
  %v1745 = vmul.f32 %v1674, %v1710
  %v1746 = vmul.f32 %v1675, %v1710
  %v1747 = vmul.f32 %v1676, %v1710
  %v1748 = vmul.f32 %v1677, %v1710
  %v1749 = vmul.f32 %v1678, %v1710
  %v1750 = vmul.f32 %v1679, %v1710
  %v1751 = vmul.f32 %v1680, %v1710
  %v1752 = vmul.f32 %v1681, %v1710
  %v1753 = vmul.f32 %v1682, %v1710
  %v1754 = vmul.f32 %v1683, %v1710
  %v1755 = vmul.f32 %v1684, %v1710
  %v1756 = vmul.f32 %v1685, %v1710
  %v1757 = vmul.f32 %v1686, %v1710
  %v1758 = vmul.f32 %v1687, %v1710
  %v1759 = vmul.f32 %v1688, %v1710
  %v1760 = vmul.f32 %v1689, %v1710
  %v1761 = vmul.f32 %v1690, %v1710
  %v1762 = vmul.f32 %v1691, %v1710
  %v1763 = vmul.f32 %v1692, %v1710
  %v1764 = vmul.f32 %v1693, %v1710
  %v1765 = vmul.f32 %v1694, %v1710
  %v1766 = vmul.f32 %v1695, %v1710
  %v1767 = vmul.f32 %v1696, %v1710
  %v1768 = vmul.f32 %v1697, %v1710
  %v1769 = vmul.f32 %v1698, %v1710
  %v1770 = vmul.f32 %v1699, %v1710
  %v1771 = vmul.f32 %v1700, %v1710
  %v1772 = vmul.f32 %v1701, %v1710
  %v1773 = vmul.f32 %v1702, %v1710
  %v1774 = vmul.f32 %v1703, %v1710
  %v1775 = vmul.f32 %v1704, %v1710
  %v1776 = vld [vmem:[%s4] sm:$0x1]
  %v1778 = vlaneseq
  %v1779 = vshrl.u32 %v1778, 7
  %v1780 = vsub.s32 0, %v1779
  %v1781 = vrot.slane %v1776, %v1780
  %v1783 = vadd.f32 %v1712, %v1781
  %v1784 = vadd.f32 %v1713, %v1781
  %v1785 = vadd.f32 %v1714, %v1781
  %v1786 = vadd.f32 %v1715, %v1781
  %v1787 = vadd.f32 %v1716, %v1781
  %v1788 = vadd.f32 %v1717, %v1781
  %v1789 = vadd.f32 %v1718, %v1781
  %v1790 = vadd.f32 %v1719, %v1781
  %v1791 = vadd.f32 %v1720, %v1781
  %v1792 = vadd.f32 %v1721, %v1781
  %v1793 = vadd.f32 %v1722, %v1781
  %v1794 = vadd.f32 %v1723, %v1781
  %v1795 = vadd.f32 %v1724, %v1781
  %v1796 = vadd.f32 %v1725, %v1781
  %v1797 = vadd.f32 %v1726, %v1781
  %v1798 = vadd.f32 %v1727, %v1781
  %v1799 = vadd.f32 %v1728, %v1781
  %v1800 = vadd.f32 %v1729, %v1781
  %v1801 = vadd.f32 %v1730, %v1781
  %v1802 = vadd.f32 %v1731, %v1781
  %v1803 = vadd.f32 %v1732, %v1781
  %v1804 = vadd.f32 %v1733, %v1781
  %v1805 = vadd.f32 %v1734, %v1781
  %v1806 = vadd.f32 %v1735, %v1781
  %v1807 = vadd.f32 %v1736, %v1781
  %v1808 = vadd.f32 %v1737, %v1781
  %v1809 = vadd.f32 %v1738, %v1781
  %v1810 = vadd.f32 %v1739, %v1781
  %v1811 = vadd.f32 %v1740, %v1781
  %v1812 = vadd.f32 %v1741, %v1781
  %v1813 = vadd.f32 %v1742, %v1781
  %v1814 = vadd.f32 %v1743, %v1781
  %v1815 = vadd.f32 %v1744, %v1781
  %v1816 = vadd.f32 %v1745, %v1781
  %v1817 = vadd.f32 %v1746, %v1781
  %v1818 = vadd.f32 %v1747, %v1781
  %v1819 = vadd.f32 %v1748, %v1781
  %v1820 = vadd.f32 %v1749, %v1781
  %v1821 = vadd.f32 %v1750, %v1781
  %v1822 = vadd.f32 %v1751, %v1781
  %v1823 = vadd.f32 %v1752, %v1781
  %v1824 = vadd.f32 %v1753, %v1781
  %v1825 = vadd.f32 %v1754, %v1781
  %v1826 = vadd.f32 %v1755, %v1781
  %v1827 = vadd.f32 %v1756, %v1781
  %v1828 = vadd.f32 %v1757, %v1781
  %v1829 = vadd.f32 %v1758, %v1781
  %v1830 = vadd.f32 %v1759, %v1781
  %v1831 = vadd.f32 %v1760, %v1781
  %v1832 = vadd.f32 %v1761, %v1781
  %v1833 = vadd.f32 %v1762, %v1781
  %v1834 = vadd.f32 %v1763, %v1781
  %v1835 = vadd.f32 %v1764, %v1781
  %v1836 = vadd.f32 %v1765, %v1781
  %v1837 = vadd.f32 %v1766, %v1781
  %v1838 = vadd.f32 %v1767, %v1781
  %v1839 = vadd.f32 %v1768, %v1781
  %v1840 = vadd.f32 %v1769, %v1781
  %v1841 = vadd.f32 %v1770, %v1781
  %v1842 = vadd.f32 %v1771, %v1781
  %v1843 = vadd.f32 %v1772, %v1781
  %v1844 = vadd.f32 %v1773, %v1781
  %v1845 = vadd.f32 %v1774, %v1781
  %v1846 = vadd.f32 %v1775, %v1781
  %1847 = vst [vmem:[%s5] sm:$0xff] %v1783
  %1848 = vst [vmem:[%s5 + $0x8] sm:$0xff] %v1784
  %1849 = vst [vmem:[%s5 + $0x10] sm:$0xff] %v1785
  %1850 = vst [vmem:[%s5 + $0x18] sm:$0xff] %v1786
  %1851 = vst [vmem:[%s5 + $0x20] sm:$0xff] %v1787
  %1852 = vst [vmem:[%s5 + $0x28] sm:$0xff] %v1788
  %1853 = vst [vmem:[%s5 + $0x30] sm:$0xff] %v1789
  %1854 = vst [vmem:[%s5 + $0x38] sm:$0xff] %v1790
  %1855 = vst [vmem:[%s5 + $0x40] sm:$0xff] %v1791
  %1856 = vst [vmem:[%s5 + $0x48] sm:$0xff] %v1792
  %1857 = vst [vmem:[%s5 + $0x50] sm:$0xff] %v1793
  %1858 = vst [vmem:[%s5 + $0x58] sm:$0xff] %v1794
  %1859 = vst [vmem:[%s5 + $0x60] sm:$0xff] %v1795
  %1860 = vst [vmem:[%s5 + $0x68] sm:$0xff] %v1796
  %1861 = vst [vmem:[%s5 + $0x70] sm:$0xff] %v1797
  %1862 = vst [vmem:[%s5 + $0x78] sm:$0xff] %v1798
  %1863 = vst [vmem:[%s5 + $0x80] sm:$0xff] %v1799
  %1864 = vst [vmem:[%s5 + $0x88] sm:$0xff] %v1800
  %1865 = vst [vmem:[%s5 + $0x90] sm:$0xff] %v1801
  %1866 = vst [vmem:[%s5 + $0x98] sm:$0xff] %v1802
  %1867 = vst [vmem:[%s5 + $0xa0] sm:$0xff] %v1803
  %1868 = vst [vmem:[%s5 + $0xa8] sm:$0xff] %v1804
  %1869 = vst [vmem:[%s5 + $0xb0] sm:$0xff] %v1805
  %1870 = vst [vmem:[%s5 + $0xb8] sm:$0xff] %v1806
  %1871 = vst [vmem:[%s5 + $0xc0] sm:$0xff] %v1807
  %1872 = vst [vmem:[%s5 + $0xc8] sm:$0xff] %v1808
  %1873 = vst [vmem:[%s5 + $0xd0] sm:$0xff] %v1809
  %1874 = vst [vmem:[%s5 + $0xd8] sm:$0xff] %v1810
  %1875 = vst [vmem:[%s5 + $0xe0] sm:$0xff] %v1811
  %1876 = vst [vmem:[%s5 + $0xe8] sm:$0xff] %v1812
  %1877 = vst [vmem:[%s5 + $0xf0] sm:$0xff] %v1813
  %1878 = vst [vmem:[%s5 + $0xf8] sm:$0xff] %v1814
  %1879 = vst [vmem:[%s5 + $0x100] sm:$0xff] %v1815
  %1880 = vst [vmem:[%s5 + $0x108] sm:$0xff] %v1816
  %1881 = vst [vmem:[%s5 + $0x110] sm:$0xff] %v1817
  %1882 = vst [vmem:[%s5 + $0x118] sm:$0xff] %v1818
  %1883 = vst [vmem:[%s5 + $0x120] sm:$0xff] %v1819
  %1884 = vst [vmem:[%s5 + $0x128] sm:$0xff] %v1820
  %1885 = vst [vmem:[%s5 + $0x130] sm:$0xff] %v1821
  %1886 = vst [vmem:[%s5 + $0x138] sm:$0xff] %v1822
  %1887 = vst [vmem:[%s5 + $0x140] sm:$0xff] %v1823
  %1888 = vst [vmem:[%s5 + $0x148] sm:$0xff] %v1824
  %1889 = vst [vmem:[%s5 + $0x150] sm:$0xff] %v1825
  %1890 = vst [vmem:[%s5 + $0x158] sm:$0xff] %v1826
  %1891 = vst [vmem:[%s5 + $0x160] sm:$0xff] %v1827
  %1892 = vst [vmem:[%s5 + $0x168] sm:$0xff] %v1828
  %1893 = vst [vmem:[%s5 + $0x170] sm:$0xff] %v1829
  %1894 = vst [vmem:[%s5 + $0x178] sm:$0xff] %v1830
  %1895 = vst [vmem:[%s5 + $0x180] sm:$0xff] %v1831
  %1896 = vst [vmem:[%s5 + $0x188] sm:$0xff] %v1832
  %1897 = vst [vmem:[%s5 + $0x190] sm:$0xff] %v1833
  %1898 = vst [vmem:[%s5 + $0x198] sm:$0xff] %v1834
  %1899 = vst [vmem:[%s5 + $0x1a0] sm:$0xff] %v1835
  %1900 = vst [vmem:[%s5 + $0x1a8] sm:$0xff] %v1836
  %1901 = vst [vmem:[%s5 + $0x1b0] sm:$0xff] %v1837
  %1902 = vst [vmem:[%s5 + $0x1b8] sm:$0xff] %v1838
  %1903 = vst [vmem:[%s5 + $0x1c0] sm:$0xff] %v1839
  %1904 = vst [vmem:[%s5 + $0x1c8] sm:$0xff] %v1840
  %1905 = vst [vmem:[%s5 + $0x1d0] sm:$0xff] %v1841
  %1906 = vst [vmem:[%s5 + $0x1d8] sm:$0xff] %v1842
  %1907 = vst [vmem:[%s5 + $0x1e0] sm:$0xff] %v1843
  %1908 = vst [vmem:[%s5 + $0x1e8] sm:$0xff] %v1844
  %1909 = vst [vmem:[%s5 + $0x1f0] sm:$0xff] %v1845
  %1910 = vst [vmem:[%s5 + $0x1f8] sm:$0xff] %v1846
  // Predicated region
  $region22: #{patch_expand2d.1} parent=0 // pred_check
    _
  $region23: #{patch_expand2d.1} parent=0 // pred_check_branch
    %1912 = sbr.rel (0) target = $region25
  $region24: #{patch_expand2d.1} parent=0 // pred_region
    _
  $region25: #{patch_expand2d.1} parent=0 // pred_fallthru
    _
  // Predicated region
  $region26: #{patch_expand2d.1} parent=0 // pred_check
    _
  $region27: #{patch_expand2d.1} parent=0 // pred_check_branch
    %1914 = sbr.rel (0) target = $region29
  $region28: #{patch_expand2d.1} parent=0 // pred_region
    _
  $region29: #{patch_expand2d.1} parent=0 // pred_fallthru
    _

</llo_original>
